<compile_context>
chip_gen: v6e
topology: v6e:2x2x1
jax: 0.10.0
libtpu: 0.0.40
codegen_flags: <defaults>
</compile_context>

<pallas_src>
import functools

import numpy as np
import jax
import jax.numpy as jnp
from jax import lax
from jax.experimental import pallas as pl
from jax.experimental.pallas import tpu as pltpu


# ----------------------------------------------------------------------------
# Host-side constant builders (trace-time numpy; shapes are static under jit)
# ----------------------------------------------------------------------------
def _bilinear_matrix(n):
    """1-D matrix for nn.Upsample(scale_factor=2, mode='bilinear') (align_corners=False)."""
    m = np.zeros((2 * n, n), np.float32)
    for i in range(2 * n):
        src = max((i + 0.5) * 0.5 - 0.5, 0.0)
        i0 = int(np.floor(src))
        i1 = min(i0 + 1, n - 1)
        frac = src - i0
        m[i, i0] += 1.0 - frac
        m[i, i1] += frac
    return m


def _conv_masks(H, W):
    """(9, 1, H*W) validity masks for the shifted-view 3x3 conv (zero padding)."""
    hh, ww = np.meshgrid(np.arange(H), np.arange(W), indexing="ij")
    m = np.zeros((9, 1, H * W), np.float32)
    for k in range(9):
        dy, dx = k // 3 - 1, k % 3 - 1
        valid = (hh + dy >= 0) & (hh + dy < H) & (ww + dx >= 0) & (ww + dx < W)
        m[k, 0, :] = valid.reshape(-1).astype(np.float32)
    return m


def _group_avg_matrix(C, num_groups, hw):
    """(C, C) matrix mapping per-channel sums -> per-group means (incl. 1/(cg*hw))."""
    cg = C // num_groups
    a = np.zeros((C, C), np.float32)
    for g in range(num_groups):
        a[g * cg:(g + 1) * cg, g * cg:(g + 1) * cg] = 1.0 / (cg * hw)
    return a


# ----------------------------------------------------------------------------
# Fused Decoder kernel (one grid step == one batch element, fully in VMEM)
# ----------------------------------------------------------------------------
def _decoder_kernel(x_ref, bias_ref, kt_ref, mask_ref, upw_ref, wc_ref, vec_ref,
                    avg_ref, o_ref, *, R, C, Wo, HWo):
    def _sigmoid(v):
        # exp + approximate reciprocal both land on the EUP slot.
        return pl.reciprocal(1.0 + jnp.exp(-v), approx=True)

    def conv3x3(h, w_bf16, bias_col):
        # h: (Cin_, HWo) f32.  Build the (9*Cin_, HWo) stacked operand (tap-major
        # along the contraction axis), cast to bf16 ONCE, then a single MXU matmul.
        views = []
        for k in range(9):
            dy, dx = k // 3 - 1, k % 3 - 1
            if dy == 0 and dx == 0:
                views.append(h)
            else:
                shift = (-(dy * Wo + dx)) % HWo
                views.append(pltpu.roll(h, shift, axis=1) * mask_ref[k])
        stacked = jnp.concatenate(views, axis=0).astype(jnp.bfloat16)
        return jnp.dot(w_bf16, stacked,
                       preferred_element_type=jnp.float32) + bias_col

    def gn_silu(h, gamma, beta):
        # GroupNorm via lane reductions + ONE tiny (C,C)@(C,2) group-average matmul.
        s = jnp.concatenate(
            [jnp.sum(h, axis=1, keepdims=True),
             jnp.sum(h * h, axis=1, keepdims=True)], axis=1)          # (C, 2)
        stats = jnp.dot(avg_ref[...], s, preferred_element_type=jnp.float32)
        mean = stats[:, 0:1]
        var = jnp.maximum(stats[:, 1:2] - mean * mean, 0.0)           # clamp
        y = (h - mean) * lax.rsqrt(var + 1e-5) * gamma + beta
        return y * _sigmoid(y)

    # --- bilinear x2 upsample: one MXU matmul against kron(Uh, Uw)^T ---
    x = x_ref[0]                                                      # (Cin, HWin)
    up = jnp.dot(x.astype(jnp.bfloat16), kt_ref[...],
                 preferred_element_type=jnp.float32)                  # (Cin, HWo)

    # --- conv after upsample ---
    h = conv3x3(up, upw_ref[...], vec_ref[0])                         # (C, HWo)

    # --- residual blocks (R is small; unrolled.  Use fori_loop if scaled up.) ---
    for r in range(R):
        res = h
        v = 1 + 6 * r
        h = conv3x3(h, wc_ref[r, 0], vec_ref[v + 0])
        h = gn_silu(h, vec_ref[v + 1], vec_ref[v + 2])
        h = h + bias_ref[0, r]                                        # t-bias + y-bias
        h = conv3x3(h, wc_ref[r, 1], vec_ref[v + 3])
        h = gn_silu(h, vec_ref[v + 4], vec_ref[v + 5])
        h = h + res

    o_ref[0] = h


# ----------------------------------------------------------------------------
# Wrapper: weight repacking (tiny glue) + one pallas_call
# ----------------------------------------------------------------------------
def decoder_forward(params, x, t_embed, y_embed):
    B, Cin, H, W = x.shape
    up_w = params["up_w"]                       # (C, Cin, 3, 3)
    C = up_w.shape[0]
    blocks = params["res_blocks"]
    R = len(blocks)
    Ho, Wo = 2 * H, 2 * W
    HWin, HWo = H * W, Ho * Wo
    assert C % 8 == 0 or C == 8, "GroupNorm(num_groups=8) requires C % 8 == 0"

    # Constants baked at trace time.
    kt = np.kron(_bilinear_matrix(H), _bilinear_matrix(W)).T          # (HWin, HWo)
    masks = _conv_masks(Ho, Wo)                                       # (9, 1, HWo)
    avg = _group_avg_matrix(C, 8, HWo)                                # (C, C)

    def pack_conv(w):
        # (Co, Ci, 3, 3) -> (Co, 9*Ci) bf16; column index = (ky*3+kx)*Ci + ci,
        # matching the tap-major stacked operand built inside the kernel.
        co, ci = w.shape[0], w.shape[1]
        return w.transpose(0, 2, 3, 1).reshape(co, 9 * ci).astype(jnp.bfloat16)

    upw = pack_conv(up_w)                                             # (C, 9*Cin)
    wconv = jnp.stack([jnp.stack([pack_conv(b["conv1_w"]),
                                  pack_conv(b["conv2_w"])]) for b in blocks])
    # All small per-channel vectors in one operand: [up_b] + per block
    # [conv1_b, gn1_g, gn1_b, conv2_b, gn2_g, gn2_b].
    vec_list = [params["up_b"]]
    for b in blocks:
        vec_list += [b["conv1_b"], b["gn1_g"], b["gn1_b"],
                     b["conv2_b"], b["gn2_g"], b["gn2_b"]]
    vecs = jnp.stack(vec_list).reshape(1 + 6 * R, C, 1).astype(jnp.float32)

    # Per-sample time/label bias precomputed with plain XLA (removes the N=1
    # adapter matmul from the in-kernel critical path).
    se = jax.nn.silu(jnp.concatenate([t_embed, y_embed], axis=1))     # (B, D)
    wty = jnp.stack([jnp.concatenate([b["t_w"], b["y_w"]], axis=1)
                     for b in blocks])                                # (R, C, D)
    bty = jnp.stack([b["t_b"] + b["y_b"] for b in blocks])            # (R, C)
    biasall = (jnp.einsum("bd,rcd->brc", se, wty) + bty
               ).reshape(B, R, C, 1).astype(jnp.float32)

    x2 = x.reshape(B, Cin, HWin).astype(jnp.float32)

    kernel = functools.partial(_decoder_kernel, R=R, C=C, Wo=Wo, HWo=HWo)

    out = pl.pallas_call(
        kernel,
        out_shape=jax.ShapeDtypeStruct((B, C, HWo), jnp.float32),
        grid=(B,),
        in_specs=[
            pl.BlockSpec((1, Cin, HWin), lambda b: (b, 0, 0)),        # x
            pl.BlockSpec((1, R, C, 1), lambda b: (b, 0, 0, 0)),       # t/y bias (per b)
            pl.BlockSpec((HWin, HWo), lambda b: (0, 0)),              # kron upsample mat
            pl.BlockSpec((9, 1, HWo), lambda b: (0, 0, 0)),           # conv validity masks
            pl.BlockSpec((C, 9 * Cin), lambda b: (0, 0)),             # up-conv taps
            pl.BlockSpec((R, 2, C, 9 * C), lambda b: (0, 0, 0, 0)),   # block conv taps
            pl.BlockSpec((1 + 6 * R, C, 1), lambda b: (0, 0, 0)),     # biases / GN affine
            pl.BlockSpec((C, C), lambda b: (0, 0)),                   # group-average mat
        ],
        out_specs=pl.BlockSpec((1, C, HWo), lambda b: (b, 0, 0)),
        compiler_params=pltpu.CompilerParams(
            dimension_semantics=("parallel",),
            vmem_limit_bytes=32 * 1024 * 1024),
    )(
        x2,
        biasall,
        jnp.asarray(kt, jnp.bfloat16),
        jnp.asarray(masks, jnp.float32),
        upw, wconv, vecs,
        jnp.asarray(avg, jnp.float32),
    )
    return out.reshape(B, C, Ho, Wo)


# ----------------------------------------------------------------------------
# Pure-JAX reference (for a loose sanity check of the fused kernel)
# ----------------------------------------------------------------------------
def _reference_forward(params, x, t_embed, y_embed):
    H, W = x.shape[2], x.shape[3]
    uh = jnp.asarray(_bilinear_matrix(H))
    uw = jnp.asarray(_bilinear_matrix(W))

    def conv3x3(h, w, b):
        y = lax.conv_general_dilated(h, w, (1, 1), ((1, 1), (1, 1)),
                                     dimension_numbers=("NCHW", "OIHW", "NCHW"))
        return y + b[None, :, None, None]

    def gn(h, g, bgn, groups=8):
        B, C, Hh, Ww = h.shape
        hr = h.reshape(B, groups, -1)
        m = hr.mean(-1, keepdims=True)
        v = hr.var(-1, keepdims=True)
        hn = ((hr - m) / jnp.sqrt(v + 1e-5)).reshape(B, C, Hh, Ww)
        return hn * g[None, :, None, None] + bgn[None, :, None, None]

    h = jnp.einsum("bchw,Hh,Ww->bcHW", x, uh, uw)
    h = conv3x3(h, params["up_w"], params["up_b"])
    for blk in params["res_blocks"]:
        res = h
        h = jax.nn.silu(gn(conv3x3(h, blk["conv1_w"], blk["conv1_b"]),
                           blk["gn1_g"], blk["gn1_b"]))
        tb = jax.nn.silu(t_embed) @ blk["t_w"].T + blk["t_b"]
        yb = jax.nn.silu(y_embed) @ blk["y_w"].T + blk["y_b"]
        h = h + (tb + yb)[:, :, None, None]
        h = jax.nn.silu(gn(conv3x3(h, blk["conv2_w"], blk["conv2_b"]),
                           blk["gn2_g"], blk["gn2_b"]))
        h = h + res
    return h


# ----------------------------------------------------------------------------
# Parameter init mirroring the PyTorch Decoder
# ----------------------------------------------------------------------------
class _KeyGen:
    def __init__(self, key):
        self.key = key

    def __call__(self, shape, scale=0.1):
        self.key, sub = jax.random.split(self.key)
        return jax.random.normal(sub, shape, jnp.float32) * scale


def init_decoder_params(key, channels_in, channels_out, num_res, t_dim, y_dim):
    kg = _KeyGen(key)
    c = channels_out
    blocks = []
    for _ in range(num_res):
        blocks.append(dict(
            conv1_w=kg((c, c, 3, 3)), conv1_b=kg((c,)),
            gn1_g=jnp.ones((c,), jnp.float32), gn1_b=jnp.zeros((c,), jnp.float32),
            conv2_w=kg((c, c, 3, 3)), conv2_b=kg((c,)),
            gn2_g=jnp.ones((c,), jnp.float32), gn2_b=jnp.zeros((c,), jnp.float32),
            t_w=kg((c, t_dim)), t_b=kg((c,)),
            y_w=kg((c, y_dim)), y_b=kg((c,)),
        ))
    return dict(up_w=kg((c, channels_in, 3, 3)), up_b=kg((c,)), res_blocks=blocks)


# ----------------------------------------------------------------------------
if __name__ == "__main__":
    key = jax.random.PRNGKey(0)
    B = 2
    channels_in, channels_out = 16, 8
    num_residual_layers = 2
    t_embed_dim = y_embed_dim = 16
    H = W = 8                      # upsampled to 16x16 inside the decoder

    kp, kx, ktk, kyk = jax.random.split(key, 4)
    params = init_decoder_params(kp, channels_in, channels_out,
                                 num_residual_layers, t_embed_dim, y_embed_dim)
    x = jax.random.normal(kx, (B, channels_in, H, W), jnp.float32)
    t_embed = jax.random.normal(ktk, (B, t_embed_dim), jnp.float32)
    y_embed = jax.random.normal(kyk, (B, y_embed_dim), jnp.float32)

    fwd = jax.jit(decoder_forward)
    out = jax.block_until_ready(fwd(params, x, t_embed, y_embed))

    assert out.shape == (B, channels_out, 2 * H, 2 * W), out.shape
    assert bool(jnp.all(jnp.isfinite(out)))

    # Loose sanity check against a pure-JAX reference (bf16 MXU + approx
    # reciprocal in the kernel -> allow generous tolerance).
    ref = _reference_forward(params, x, t_embed, y_embed)
    max_diff = float(jnp.max(jnp.abs(out - ref)))
    assert max_diff < 0.25, f"kernel deviates from reference: max |diff| = {max_diff}"

    print("KERNEL_OK")
</pallas_src>

<mosaic_0001>
module attributes {stable_mosaic.version = 11 : i64} {
  func.func @_decoder_kernel(%arg0: i32, %arg1: memref<1x16x64xf32, #tpu.memory_space<vmem>>, %arg2: memref<1x2x8x1xf32, #tpu.memory_space<vmem>>, %arg3: memref<64x256xbf16, #tpu.memory_space<vmem>>, %arg4: memref<9x1x256xf32, #tpu.memory_space<vmem>>, %arg5: memref<8x144xbf16, #tpu.memory_space<vmem>>, %arg6: memref<2x2x8x72xbf16, #tpu.memory_space<vmem>>, %arg7: memref<13x8x1xf32, #tpu.memory_space<vmem>>, %arg8: memref<8x8xf32, #tpu.memory_space<vmem>>, %arg9: memref<1x8x256xf32, #tpu.memory_space<vmem>>) attributes {dimension_semantics = [#tpu.dimension_semantics<parallel>], iteration_bounds = array<i64: 2>, scalar_prefetch = 0 : i64, scratch_operands = 0 : i64, tpu.core_type = #tpu.core_type<tc>, window_params = [{transform_indices = @transform_0, window_bounds = array<i64: 1, 16, 64>}, {transform_indices = @transform_1, window_bounds = array<i64: 1, 2, 8, 1>}, {pipeline_mode = #tpu.pipeline_mode<synchronous>, transform_indices = @transform_2, window_bounds = array<i64: 64, 256>}, {pipeline_mode = #tpu.pipeline_mode<synchronous>, transform_indices = @transform_3, window_bounds = array<i64: 9, 1, 256>}, {pipeline_mode = #tpu.pipeline_mode<synchronous>, transform_indices = @transform_4, window_bounds = array<i64: 8, 144>}, {pipeline_mode = #tpu.pipeline_mode<synchronous>, transform_indices = @transform_5, window_bounds = array<i64: 2, 2, 8, 72>}, {pipeline_mode = #tpu.pipeline_mode<synchronous>, transform_indices = @transform_6, window_bounds = array<i64: 13, 8, 1>}, {pipeline_mode = #tpu.pipeline_mode<synchronous>, transform_indices = @transform_7, window_bounds = array<i64: 8, 8>}, {transform_indices = @transform_8, window_bounds = array<i64: 1, 8, 256>}]} {
    %c0 = arith.constant 0 : index
    %c0_0 = arith.constant 0 : index
    %c0_1 = arith.constant 0 : index
    %0 = vector.load %arg1[%c0, %c0_0, %c0_1] : memref<1x16x64xf32, #tpu.memory_space<vmem>>, vector<1x16x64xf32>
    %1 = vector.shape_cast %0 : vector<1x16x64xf32> to vector<16x64xf32>
    %2 = arith.truncf %1 : vector<16x64xf32> to vector<16x64xbf16>
    %c0_2 = arith.constant 0 : index
    %c0_3 = arith.constant 0 : index
    %3 = vector.load %arg3[%c0_2, %c0_3] : memref<64x256xbf16, #tpu.memory_space<vmem>>, vector<64x256xbf16>
    %cst = arith.constant dense<0.000000e+00> : vector<16x256xf32>
    %4 = tpu.matmul %2, %3, %cst {dimension_numbers = #tpu.dot_dimension_numbers<[1], [0], [0], [1], [0, 0, 1, 1], [], []>} : vector<16x64xbf16>, vector<64x256xbf16>, vector<16x256xf32> -> vector<16x256xf32>
    %c0_4 = arith.constant 0 : index
    %c0_5 = arith.constant 0 : index
    %5 = vector.load %arg5[%c0_4, %c0_5] : memref<8x144xbf16, #tpu.memory_space<vmem>>, vector<8x144xbf16>
    %c0_6 = arith.constant 0 : index
    %c0_7 = arith.constant 0 : index
    %c0_8 = arith.constant 0 : index
    %6 = vector.load %arg7[%c0_6, %c0_7, %c0_8] : memref<13x8x1xf32, #tpu.memory_space<vmem>>, vector<1x8x1xf32>
    %7 = vector.shape_cast %6 : vector<1x8x1xf32> to vector<8x1xf32>
    %c17_i32 = arith.constant 17 : i32
    %8 = tpu.dynamic_rotate %4 by %c17_i32 dim 1 : vector<16x256xf32>, i32 -> vector<16x256xf32>
    %c0_9 = arith.constant 0 : index
    %c0_10 = arith.constant 0 : index
    %c0_11 = arith.constant 0 : index
    %9 = vector.load %arg4[%c0_9, %c0_10, %c0_11] : memref<9x1x256xf32, #tpu.memory_space<vmem>>, vector<1x1x256xf32>
    %10 = vector.shape_cast %9 : vector<1x1x256xf32> to vector<1x256xf32>
    %11 = vector.broadcast %10 : vector<1x256xf32> to vector<16x256xf32>
    %12 = arith.mulf %8, %11 : vector<16x256xf32>
    %c16_i32 = arith.constant 16 : i32
    %13 = tpu.dynamic_rotate %4 by %c16_i32 dim 1 : vector<16x256xf32>, i32 -> vector<16x256xf32>
    %c1 = arith.constant 1 : index
    %c0_12 = arith.constant 0 : index
    %c0_13 = arith.constant 0 : index
    %14 = vector.load %arg4[%c1, %c0_12, %c0_13] : memref<9x1x256xf32, #tpu.memory_space<vmem>>, vector<1x1x256xf32>
    %15 = vector.shape_cast %14 : vector<1x1x256xf32> to vector<1x256xf32>
    %16 = vector.broadcast %15 : vector<1x256xf32> to vector<16x256xf32>
    %17 = arith.mulf %13, %16 : vector<16x256xf32>
    %c15_i32 = arith.constant 15 : i32
    %18 = tpu.dynamic_rotate %4 by %c15_i32 dim 1 : vector<16x256xf32>, i32 -> vector<16x256xf32>
    %c2 = arith.constant 2 : index
    %c0_14 = arith.constant 0 : index
    %c0_15 = arith.constant 0 : index
    %19 = vector.load %arg4[%c2, %c0_14, %c0_15] : memref<9x1x256xf32, #tpu.memory_space<vmem>>, vector<1x1x256xf32>
    %20 = vector.shape_cast %19 : vector<1x1x256xf32> to vector<1x256xf32>
    %21 = vector.broadcast %20 : vector<1x256xf32> to vector<16x256xf32>
    %22 = arith.mulf %18, %21 : vector<16x256xf32>
    %c1_i32 = arith.constant 1 : i32
    %23 = tpu.dynamic_rotate %4 by %c1_i32 dim 1 : vector<16x256xf32>, i32 -> vector<16x256xf32>
    %c3 = arith.constant 3 : index
    %c0_16 = arith.constant 0 : index
    %c0_17 = arith.constant 0 : index
    %24 = vector.load %arg4[%c3, %c0_16, %c0_17] : memref<9x1x256xf32, #tpu.memory_space<vmem>>, vector<1x1x256xf32>
    %25 = vector.shape_cast %24 : vector<1x1x256xf32> to vector<1x256xf32>
    %26 = vector.broadcast %25 : vector<1x256xf32> to vector<16x256xf32>
    %27 = arith.mulf %23, %26 : vector<16x256xf32>
    %c255_i32 = arith.constant 255 : i32
    %28 = tpu.dynamic_rotate %4 by %c255_i32 dim 1 : vector<16x256xf32>, i32 -> vector<16x256xf32>
    %c5 = arith.constant 5 : index
    %c0_18 = arith.constant 0 : index
    %c0_19 = arith.constant 0 : index
    %29 = vector.load %arg4[%c5, %c0_18, %c0_19] : memref<9x1x256xf32, #tpu.memory_space<vmem>>, vector<1x1x256xf32>
    %30 = vector.shape_cast %29 : vector<1x1x256xf32> to vector<1x256xf32>
    %31 = vector.broadcast %30 : vector<1x256xf32> to vector<16x256xf32>
    %32 = arith.mulf %28, %31 : vector<16x256xf32>
    %c241_i32 = arith.constant 241 : i32
    %33 = tpu.dynamic_rotate %4 by %c241_i32 dim 1 : vector<16x256xf32>, i32 -> vector<16x256xf32>
    %c6 = arith.constant 6 : index
    %c0_20 = arith.constant 0 : index
    %c0_21 = arith.constant 0 : index
    %34 = vector.load %arg4[%c6, %c0_20, %c0_21] : memref<9x1x256xf32, #tpu.memory_space<vmem>>, vector<1x1x256xf32>
    %35 = vector.shape_cast %34 : vector<1x1x256xf32> to vector<1x256xf32>
    %36 = vector.broadcast %35 : vector<1x256xf32> to vector<16x256xf32>
    %37 = arith.mulf %33, %36 : vector<16x256xf32>
    %c240_i32 = arith.constant 240 : i32
    %38 = tpu.dynamic_rotate %4 by %c240_i32 dim 1 : vector<16x256xf32>, i32 -> vector<16x256xf32>
    %c7 = arith.constant 7 : index
    %c0_22 = arith.constant 0 : index
    %c0_23 = arith.constant 0 : index
    %39 = vector.load %arg4[%c7, %c0_22, %c0_23] : memref<9x1x256xf32, #tpu.memory_space<vmem>>, vector<1x1x256xf32>
    %40 = vector.shape_cast %39 : vector<1x1x256xf32> to vector<1x256xf32>
    %41 = vector.broadcast %40 : vector<1x256xf32> to vector<16x256xf32>
    %42 = arith.mulf %38, %41 : vector<16x256xf32>
    %c239_i32 = arith.constant 239 : i32
    %43 = tpu.dynamic_rotate %4 by %c239_i32 dim 1 : vector<16x256xf32>, i32 -> vector<16x256xf32>
    %c8 = arith.constant 8 : index
    %c0_24 = arith.constant 0 : index
    %c0_25 = arith.constant 0 : index
    %44 = vector.load %arg4[%c8, %c0_24, %c0_25] : memref<9x1x256xf32, #tpu.memory_space<vmem>>, vector<1x1x256xf32>
    %45 = vector.shape_cast %44 : vector<1x1x256xf32> to vector<1x256xf32>
    %46 = vector.broadcast %45 : vector<1x256xf32> to vector<16x256xf32>
    %47 = arith.mulf %43, %46 : vector<16x256xf32>
    %48 = tpu.concatenate %12, %17, %22, %27, %4, %32, %37, %42, %47 in 0 : vector<16x256xf32>, vector<16x256xf32>, vector<16x256xf32>, vector<16x256xf32>, vector<16x256xf32>, vector<16x256xf32>, vector<16x256xf32>, vector<16x256xf32>, vector<16x256xf32> -> vector<144x256xf32>
    %49 = arith.truncf %48 : vector<144x256xf32> to vector<144x256xbf16>
    %cst_26 = arith.constant dense<0.000000e+00> : vector<8x256xf32>
    %50 = tpu.matmul %5, %49, %cst_26 {dimension_numbers = #tpu.dot_dimension_numbers<[1], [0], [0], [1], [0, 0, 1, 1], [], []>} : vector<8x144xbf16>, vector<144x256xbf16>, vector<8x256xf32> -> vector<8x256xf32>
    %51 = vector.broadcast %7 : vector<8x1xf32> to vector<8x256xf32>
    %52 = arith.addf %50, %51 : vector<8x256xf32>
    %c0_27 = arith.constant 0 : index
    %c0_28 = arith.constant 0 : index
    %c0_29 = arith.constant 0 : index
    %c0_30 = arith.constant 0 : index
    %53 = vector.load %arg6[%c0_27, %c0_28, %c0_29, %c0_30] : memref<2x2x8x72xbf16, #tpu.memory_space<vmem>>, vector<1x1x8x72xbf16>
    %54 = vector.shape_cast %53 : vector<1x1x8x72xbf16> to vector<8x72xbf16>
    %c1_31 = arith.constant 1 : index
    %c0_32 = arith.constant 0 : index
    %c0_33 = arith.constant 0 : index
    %55 = vector.load %arg7[%c1_31, %c0_32, %c0_33] : memref<13x8x1xf32, #tpu.memory_space<vmem>>, vector<1x8x1xf32>
    %56 = vector.shape_cast %55 : vector<1x8x1xf32> to vector<8x1xf32>
    %c17_i32_34 = arith.constant 17 : i32
    %57 = tpu.dynamic_rotate %52 by %c17_i32_34 dim 1 : vector<8x256xf32>, i32 -> vector<8x256xf32>
    %c0_35 = arith.constant 0 : index
    %c0_36 = arith.constant 0 : index
    %c0_37 = arith.constant 0 : index
    %58 = vector.load %arg4[%c0_35, %c0_36, %c0_37] : memref<9x1x256xf32, #tpu.memory_space<vmem>>, vector<1x1x256xf32>
    %59 = vector.shape_cast %58 : vector<1x1x256xf32> to vector<1x256xf32>
    %60 = vector.broadcast %59 : vector<1x256xf32> to vector<8x256xf32>
    %61 = arith.mulf %57, %60 : vector<8x256xf32>
    %c16_i32_38 = arith.constant 16 : i32
    %62 = tpu.dynamic_rotate %52 by %c16_i32_38 dim 1 : vector<8x256xf32>, i32 -> vector<8x256xf32>
    %c1_39 = arith.constant 1 : index
    %c0_40 = arith.constant 0 : index
    %c0_41 = arith.constant 0 : index
    %63 = vector.load %arg4[%c1_39, %c0_40, %c0_41] : memref<9x1x256xf32, #tpu.memory_space<vmem>>, vector<1x1x256xf32>
    %64 = vector.shape_cast %63 : vector<1x1x256xf32> to vector<1x256xf32>
    %65 = vector.broadcast %64 : vector<1x256xf32> to vector<8x256xf32>
    %66 = arith.mulf %62, %65 : vector<8x256xf32>
    %c15_i32_42 = arith.constant 15 : i32
    %67 = tpu.dynamic_rotate %52 by %c15_i32_42 dim 1 : vector<8x256xf32>, i32 -> vector<8x256xf32>
    %c2_43 = arith.constant 2 : index
    %c0_44 = arith.constant 0 : index
    %c0_45 = arith.constant 0 : index
    %68 = vector.load %arg4[%c2_43, %c0_44, %c0_45] : memref<9x1x256xf32, #tpu.memory_space<vmem>>, vector<1x1x256xf32>
    %69 = vector.shape_cast %68 : vector<1x1x256xf32> to vector<1x256xf32>
    %70 = vector.broadcast %69 : vector<1x256xf32> to vector<8x256xf32>
    %71 = arith.mulf %67, %70 : vector<8x256xf32>
    %c1_i32_46 = arith.constant 1 : i32
    %72 = tpu.dynamic_rotate %52 by %c1_i32_46 dim 1 : vector<8x256xf32>, i32 -> vector<8x256xf32>
    %c3_47 = arith.constant 3 : index
    %c0_48 = arith.constant 0 : index
    %c0_49 = arith.constant 0 : index
    %73 = vector.load %arg4[%c3_47, %c0_48, %c0_49] : memref<9x1x256xf32, #tpu.memory_space<vmem>>, vector<1x1x256xf32>
    %74 = vector.shape_cast %73 : vector<1x1x256xf32> to vector<1x256xf32>
    %75 = vector.broadcast %74 : vector<1x256xf32> to vector<8x256xf32>
    %76 = arith.mulf %72, %75 : vector<8x256xf32>
    %c255_i32_50 = arith.constant 255 : i32
    %77 = tpu.dynamic_rotate %52 by %c255_i32_50 dim 1 : vector<8x256xf32>, i32 -> vector<8x256xf32>
    %c5_51 = arith.constant 5 : index
    %c0_52 = arith.constant 0 : index
    %c0_53 = arith.constant 0 : index
    %78 = vector.load %arg4[%c5_51, %c0_52, %c0_53] : memref<9x1x256xf32, #tpu.memory_space<vmem>>, vector<1x1x256xf32>
    %79 = vector.shape_cast %78 : vector<1x1x256xf32> to vector<1x256xf32>
    %80 = vector.broadcast %79 : vector<1x256xf32> to vector<8x256xf32>
    %81 = arith.mulf %77, %80 : vector<8x256xf32>
    %c241_i32_54 = arith.constant 241 : i32
    %82 = tpu.dynamic_rotate %52 by %c241_i32_54 dim 1 : vector<8x256xf32>, i32 -> vector<8x256xf32>
    %c6_55 = arith.constant 6 : index
    %c0_56 = arith.constant 0 : index
    %c0_57 = arith.constant 0 : index
    %83 = vector.load %arg4[%c6_55, %c0_56, %c0_57] : memref<9x1x256xf32, #tpu.memory_space<vmem>>, vector<1x1x256xf32>
    %84 = vector.shape_cast %83 : vector<1x1x256xf32> to vector<1x256xf32>
    %85 = vector.broadcast %84 : vector<1x256xf32> to vector<8x256xf32>
    %86 = arith.mulf %82, %85 : vector<8x256xf32>
    %c240_i32_58 = arith.constant 240 : i32
    %87 = tpu.dynamic_rotate %52 by %c240_i32_58 dim 1 : vector<8x256xf32>, i32 -> vector<8x256xf32>
    %c7_59 = arith.constant 7 : index
    %c0_60 = arith.constant 0 : index
    %c0_61 = arith.constant 0 : index
    %88 = vector.load %arg4[%c7_59, %c0_60, %c0_61] : memref<9x1x256xf32, #tpu.memory_space<vmem>>, vector<1x1x256xf32>
    %89 = vector.shape_cast %88 : vector<1x1x256xf32> to vector<1x256xf32>
    %90 = vector.broadcast %89 : vector<1x256xf32> to vector<8x256xf32>
    %91 = arith.mulf %87, %90 : vector<8x256xf32>
    %c239_i32_62 = arith.constant 239 : i32
    %92 = tpu.dynamic_rotate %52 by %c239_i32_62 dim 1 : vector<8x256xf32>, i32 -> vector<8x256xf32>
    %c8_63 = arith.constant 8 : index
    %c0_64 = arith.constant 0 : index
    %c0_65 = arith.constant 0 : index
    %93 = vector.load %arg4[%c8_63, %c0_64, %c0_65] : memref<9x1x256xf32, #tpu.memory_space<vmem>>, vector<1x1x256xf32>
    %94 = vector.shape_cast %93 : vector<1x1x256xf32> to vector<1x256xf32>
    %95 = vector.broadcast %94 : vector<1x256xf32> to vector<8x256xf32>
    %96 = arith.mulf %92, %95 : vector<8x256xf32>
    %97 = tpu.concatenate %61, %66, %71, %76, %52, %81, %86, %91, %96 in 0 : vector<8x256xf32>, vector<8x256xf32>, vector<8x256xf32>, vector<8x256xf32>, vector<8x256xf32>, vector<8x256xf32>, vector<8x256xf32>, vector<8x256xf32>, vector<8x256xf32> -> vector<72x256xf32>
    %98 = arith.truncf %97 : vector<72x256xf32> to vector<72x256xbf16>
    %cst_66 = arith.constant dense<0.000000e+00> : vector<8x256xf32>
    %99 = tpu.matmul %54, %98, %cst_66 {dimension_numbers = #tpu.dot_dimension_numbers<[1], [0], [0], [1], [0, 0, 1, 1], [], []>} : vector<8x72xbf16>, vector<72x256xbf16>, vector<8x256xf32> -> vector<8x256xf32>
    %100 = vector.broadcast %56 : vector<8x1xf32> to vector<8x256xf32>
    %101 = arith.addf %99, %100 : vector<8x256xf32>
    %c2_67 = arith.constant 2 : index
    %c0_68 = arith.constant 0 : index
    %c0_69 = arith.constant 0 : index
    %102 = vector.load %arg7[%c2_67, %c0_68, %c0_69] : memref<13x8x1xf32, #tpu.memory_space<vmem>>, vector<1x8x1xf32>
    %103 = vector.shape_cast %102 : vector<1x8x1xf32> to vector<8x1xf32>
    %c3_70 = arith.constant 3 : index
    %c0_71 = arith.constant 0 : index
    %c0_72 = arith.constant 0 : index
    %104 = vector.load %arg7[%c3_70, %c0_71, %c0_72] : memref<13x8x1xf32, #tpu.memory_space<vmem>>, vector<1x8x1xf32>
    %105 = vector.shape_cast %104 : vector<1x8x1xf32> to vector<8x1xf32>
    %cst_73 = arith.constant dense<0.000000e+00> : vector<8xf32>
    %106 = vector.multi_reduction <add>, %101, %cst_73 [1] : vector<8x256xf32> to vector<8xf32>
    %107 = vector.shape_cast %106 : vector<8xf32> to vector<8x1xf32>
    %108 = arith.mulf %101, %101 : vector<8x256xf32>
    %cst_74 = arith.constant dense<0.000000e+00> : vector<8xf32>
    %109 = vector.multi_reduction <add>, %108, %cst_74 [1] : vector<8x256xf32> to vector<8xf32>
    %110 = vector.shape_cast %109 : vector<8xf32> to vector<8x1xf32>
    %111 = tpu.concatenate %107, %110 in 1 : vector<8x1xf32>, vector<8x1xf32> -> vector<8x2xf32>
    %c0_75 = arith.constant 0 : index
    %c0_76 = arith.constant 0 : index
    %112 = vector.load %arg8[%c0_75, %c0_76] : memref<8x8xf32, #tpu.memory_space<vmem>>, vector<8x8xf32>
    %cst_77 = arith.constant dense<0.000000e+00> : vector<8x2xf32>
    %113 = tpu.matmul %112, %111, %cst_77 {dimension_numbers = #tpu.dot_dimension_numbers<[1], [0], [0], [1], [0, 0, 1, 1], [], []>} : vector<8x8xf32>, vector<8x2xf32>, vector<8x2xf32> -> vector<8x2xf32>
    %114 = vector.extract_strided_slice %113 {offsets = [0, 0], sizes = [8, 1], strides = [1, 1]} : vector<8x2xf32> to vector<8x1xf32>
    %115 = vector.extract_strided_slice %113 {offsets = [0, 1], sizes = [8, 1], strides = [1, 1]} : vector<8x2xf32> to vector<8x1xf32>
    %116 = arith.mulf %114, %114 : vector<8x1xf32>
    %117 = arith.subf %115, %116 : vector<8x1xf32>
    %cst_78 = arith.constant 0.000000e+00 : f32
    %118 = vector.broadcast %cst_78 : f32 to vector<8x1xf32>
    %119 = arith.maximumf %117, %118 : vector<8x1xf32>
    %120 = vector.broadcast %114 : vector<8x1xf32> to vector<8x256xf32>
    %121 = arith.subf %101, %120 : vector<8x256xf32>
    %cst_79 = arith.constant 9.99999974E-6 : f32
    %122 = vector.broadcast %cst_79 : f32 to vector<8x1xf32>
    %123 = arith.addf %119, %122 : vector<8x1xf32>
    %124 = math.rsqrt %123 : vector<8x1xf32>
    %125 = vector.broadcast %124 : vector<8x1xf32> to vector<8x256xf32>
    %126 = arith.mulf %121, %125 : vector<8x256xf32>
    %127 = vector.broadcast %103 : vector<8x1xf32> to vector<8x256xf32>
    %128 = arith.mulf %126, %127 : vector<8x256xf32>
    %129 = vector.broadcast %105 : vector<8x1xf32> to vector<8x256xf32>
    %130 = arith.addf %128, %129 : vector<8x256xf32>
    %cst_80 = arith.constant 0.000000e+00 : f32
    %131 = vector.broadcast %cst_80 : f32 to vector<8x256xf32>
    %132 = arith.subf %131, %130 : vector<8x256xf32>
    %133 = math.exp %132 : vector<8x256xf32>
    %cst_81 = arith.constant 1.000000e+00 : f32
    %134 = vector.broadcast %cst_81 : f32 to vector<8x256xf32>
    %135 = arith.addf %134, %133 : vector<8x256xf32>
    %136 = tpu.reciprocal %135 {approx = true} : vector<8x256xf32> -> vector<8x256xf32>
    %137 = arith.mulf %130, %136 : vector<8x256xf32>
    %c0_82 = arith.constant 0 : index
    %c0_83 = arith.constant 0 : index
    %c0_84 = arith.constant 0 : index
    %c0_85 = arith.constant 0 : index
    %138 = vector.load %arg2[%c0_82, %c0_83, %c0_84, %c0_85] : memref<1x2x8x1xf32, #tpu.memory_space<vmem>>, vector<1x1x8x1xf32>
    %139 = vector.shape_cast %138 : vector<1x1x8x1xf32> to vector<8x1xf32>
    %140 = vector.broadcast %139 : vector<8x1xf32> to vector<8x256xf32>
    %141 = arith.addf %137, %140 : vector<8x256xf32>
    %c0_86 = arith.constant 0 : index
    %c1_87 = arith.constant 1 : index
    %c0_88 = arith.constant 0 : index
    %c0_89 = arith.constant 0 : index
    %142 = vector.load %arg6[%c0_86, %c1_87, %c0_88, %c0_89] : memref<2x2x8x72xbf16, #tpu.memory_space<vmem>>, vector<1x1x8x72xbf16>
    %143 = vector.shape_cast %142 : vector<1x1x8x72xbf16> to vector<8x72xbf16>
    %c4 = arith.constant 4 : index
    %c0_90 = arith.constant 0 : index
    %c0_91 = arith.constant 0 : index
    %144 = vector.load %arg7[%c4, %c0_90, %c0_91] : memref<13x8x1xf32, #tpu.memory_space<vmem>>, vector<1x8x1xf32>
    %145 = vector.shape_cast %144 : vector<1x8x1xf32> to vector<8x1xf32>
    %c17_i32_92 = arith.constant 17 : i32
    %146 = tpu.dynamic_rotate %141 by %c17_i32_92 dim 1 : vector<8x256xf32>, i32 -> vector<8x256xf32>
    %c0_93 = arith.constant 0 : index
    %c0_94 = arith.constant 0 : index
    %c0_95 = arith.constant 0 : index
    %147 = vector.load %arg4[%c0_93, %c0_94, %c0_95] : memref<9x1x256xf32, #tpu.memory_space<vmem>>, vector<1x1x256xf32>
    %148 = vector.shape_cast %147 : vector<1x1x256xf32> to vector<1x256xf32>
    %149 = vector.broadcast %148 : vector<1x256xf32> to vector<8x256xf32>
    %150 = arith.mulf %146, %149 : vector<8x256xf32>
    %c16_i32_96 = arith.constant 16 : i32
    %151 = tpu.dynamic_rotate %141 by %c16_i32_96 dim 1 : vector<8x256xf32>, i32 -> vector<8x256xf32>
    %c1_97 = arith.constant 1 : index
    %c0_98 = arith.constant 0 : index
    %c0_99 = arith.constant 0 : index
    %152 = vector.load %arg4[%c1_97, %c0_98, %c0_99] : memref<9x1x256xf32, #tpu.memory_space<vmem>>, vector<1x1x256xf32>
    %153 = vector.shape_cast %152 : vector<1x1x256xf32> to vector<1x256xf32>
    %154 = vector.broadcast %153 : vector<1x256xf32> to vector<8x256xf32>
    %155 = arith.mulf %151, %154 : vector<8x256xf32>
    %c15_i32_100 = arith.constant 15 : i32
    %156 = tpu.dynamic_rotate %141 by %c15_i32_100 dim 1 : vector<8x256xf32>, i32 -> vector<8x256xf32>
    %c2_101 = arith.constant 2 : index
    %c0_102 = arith.constant 0 : index
    %c0_103 = arith.constant 0 : index
    %157 = vector.load %arg4[%c2_101, %c0_102, %c0_103] : memref<9x1x256xf32, #tpu.memory_space<vmem>>, vector<1x1x256xf32>
    %158 = vector.shape_cast %157 : vector<1x1x256xf32> to vector<1x256xf32>
    %159 = vector.broadcast %158 : vector<1x256xf32> to vector<8x256xf32>
    %160 = arith.mulf %156, %159 : vector<8x256xf32>
    %c1_i32_104 = arith.constant 1 : i32
    %161 = tpu.dynamic_rotate %141 by %c1_i32_104 dim 1 : vector<8x256xf32>, i32 -> vector<8x256xf32>
    %c3_105 = arith.constant 3 : index
    %c0_106 = arith.constant 0 : index
    %c0_107 = arith.constant 0 : index
    %162 = vector.load %arg4[%c3_105, %c0_106, %c0_107] : memref<9x1x256xf32, #tpu.memory_space<vmem>>, vector<1x1x256xf32>
    %163 = vector.shape_cast %162 : vector<1x1x256xf32> to vector<1x256xf32>
    %164 = vector.broadcast %163 : vector<1x256xf32> to vector<8x256xf32>
    %165 = arith.mulf %161, %164 : vector<8x256xf32>
    %c255_i32_108 = arith.constant 255 : i32
    %166 = tpu.dynamic_rotate %141 by %c255_i32_108 dim 1 : vector<8x256xf32>, i32 -> vector<8x256xf32>
    %c5_109 = arith.constant 5 : index
    %c0_110 = arith.constant 0 : index
    %c0_111 = arith.constant 0 : index
    %167 = vector.load %arg4[%c5_109, %c0_110, %c0_111] : memref<9x1x256xf32, #tpu.memory_space<vmem>>, vector<1x1x256xf32>
    %168 = vector.shape_cast %167 : vector<1x1x256xf32> to vector<1x256xf32>
    %169 = vector.broadcast %168 : vector<1x256xf32> to vector<8x256xf32>
    %170 = arith.mulf %166, %169 : vector<8x256xf32>
    %c241_i32_112 = arith.constant 241 : i32
    %171 = tpu.dynamic_rotate %141 by %c241_i32_112 dim 1 : vector<8x256xf32>, i32 -> vector<8x256xf32>
    %c6_113 = arith.constant 6 : index
    %c0_114 = arith.constant 0 : index
    %c0_115 = arith.constant 0 : index
    %172 = vector.load %arg4[%c6_113, %c0_114, %c0_115] : memref<9x1x256xf32, #tpu.memory_space<vmem>>, vector<1x1x256xf32>
    %173 = vector.shape_cast %172 : vector<1x1x256xf32> to vector<1x256xf32>
    %174 = vector.broadcast %173 : vector<1x256xf32> to vector<8x256xf32>
    %175 = arith.mulf %171, %174 : vector<8x256xf32>
    %c240_i32_116 = arith.constant 240 : i32
    %176 = tpu.dynamic_rotate %141 by %c240_i32_116 dim 1 : vector<8x256xf32>, i32 -> vector<8x256xf32>
    %c7_117 = arith.constant 7 : index
    %c0_118 = arith.constant 0 : index
    %c0_119 = arith.constant 0 : index
    %177 = vector.load %arg4[%c7_117, %c0_118, %c0_119] : memref<9x1x256xf32, #tpu.memory_space<vmem>>, vector<1x1x256xf32>
    %178 = vector.shape_cast %177 : vector<1x1x256xf32> to vector<1x256xf32>
    %179 = vector.broadcast %178 : vector<1x256xf32> to vector<8x256xf32>
    %180 = arith.mulf %176, %179 : vector<8x256xf32>
    %c239_i32_120 = arith.constant 239 : i32
    %181 = tpu.dynamic_rotate %141 by %c239_i32_120 dim 1 : vector<8x256xf32>, i32 -> vector<8x256xf32>
    %c8_121 = arith.constant 8 : index
    %c0_122 = arith.constant 0 : index
    %c0_123 = arith.constant 0 : index
    %182 = vector.load %arg4[%c8_121, %c0_122, %c0_123] : memref<9x1x256xf32, #tpu.memory_space<vmem>>, vector<1x1x256xf32>
    %183 = vector.shape_cast %182 : vector<1x1x256xf32> to vector<1x256xf32>
    %184 = vector.broadcast %183 : vector<1x256xf32> to vector<8x256xf32>
    %185 = arith.mulf %181, %184 : vector<8x256xf32>
    %186 = tpu.concatenate %150, %155, %160, %165, %141, %170, %175, %180, %185 in 0 : vector<8x256xf32>, vector<8x256xf32>, vector<8x256xf32>, vector<8x256xf32>, vector<8x256xf32>, vector<8x256xf32>, vector<8x256xf32>, vector<8x256xf32>, vector<8x256xf32> -> vector<72x256xf32>
    %187 = arith.truncf %186 : vector<72x256xf32> to vector<72x256xbf16>
    %cst_124 = arith.constant dense<0.000000e+00> : vector<8x256xf32>
    %188 = tpu.matmul %143, %187, %cst_124 {dimension_numbers = #tpu.dot_dimension_numbers<[1], [0], [0], [1], [0, 0, 1, 1], [], []>} : vector<8x72xbf16>, vector<72x256xbf16>, vector<8x256xf32> -> vector<8x256xf32>
    %189 = vector.broadcast %145 : vector<8x1xf32> to vector<8x256xf32>
    %190 = arith.addf %188, %189 : vector<8x256xf32>
    %c5_125 = arith.constant 5 : index
    %c0_126 = arith.constant 0 : index
    %c0_127 = arith.constant 0 : index
    %191 = vector.load %arg7[%c5_125, %c0_126, %c0_127] : memref<13x8x1xf32, #tpu.memory_space<vmem>>, vector<1x8x1xf32>
    %192 = vector.shape_cast %191 : vector<1x8x1xf32> to vector<8x1xf32>
    %c6_128 = arith.constant 6 : index
    %c0_129 = arith.constant 0 : index
    %c0_130 = arith.constant 0 : index
    %193 = vector.load %arg7[%c6_128, %c0_129, %c0_130] : memref<13x8x1xf32, #tpu.memory_space<vmem>>, vector<1x8x1xf32>
    %194 = vector.shape_cast %193 : vector<1x8x1xf32> to vector<8x1xf32>
    %cst_131 = arith.constant dense<0.000000e+00> : vector<8xf32>
    %195 = vector.multi_reduction <add>, %190, %cst_131 [1] : vector<8x256xf32> to vector<8xf32>
    %196 = vector.shape_cast %195 : vector<8xf32> to vector<8x1xf32>
    %197 = arith.mulf %190, %190 : vector<8x256xf32>
    %cst_132 = arith.constant dense<0.000000e+00> : vector<8xf32>
    %198 = vector.multi_reduction <add>, %197, %cst_132 [1] : vector<8x256xf32> to vector<8xf32>
    %199 = vector.shape_cast %198 : vector<8xf32> to vector<8x1xf32>
    %200 = tpu.concatenate %196, %199 in 1 : vector<8x1xf32>, vector<8x1xf32> -> vector<8x2xf32>
    %c0_133 = arith.constant 0 : index
    %c0_134 = arith.constant 0 : index
    %201 = vector.load %arg8[%c0_133, %c0_134] : memref<8x8xf32, #tpu.memory_space<vmem>>, vector<8x8xf32>
    %cst_135 = arith.constant dense<0.000000e+00> : vector<8x2xf32>
    %202 = tpu.matmul %201, %200, %cst_135 {dimension_numbers = #tpu.dot_dimension_numbers<[1], [0], [0], [1], [0, 0, 1, 1], [], []>} : vector<8x8xf32>, vector<8x2xf32>, vector<8x2xf32> -> vector<8x2xf32>
    %203 = vector.extract_strided_slice %202 {offsets = [0, 0], sizes = [8, 1], strides = [1, 1]} : vector<8x2xf32> to vector<8x1xf32>
    %204 = vector.extract_strided_slice %202 {offsets = [0, 1], sizes = [8, 1], strides = [1, 1]} : vector<8x2xf32> to vector<8x1xf32>
    %205 = arith.mulf %203, %203 : vector<8x1xf32>
    %206 = arith.subf %204, %205 : vector<8x1xf32>
    %cst_136 = arith.constant 0.000000e+00 : f32
    %207 = vector.broadcast %cst_136 : f32 to vector<8x1xf32>
    %208 = arith.maximumf %206, %207 : vector<8x1xf32>
    %209 = vector.broadcast %203 : vector<8x1xf32> to vector<8x256xf32>
    %210 = arith.subf %190, %209 : vector<8x256xf32>
    %cst_137 = arith.constant 9.99999974E-6 : f32
    %211 = vector.broadcast %cst_137 : f32 to vector<8x1xf32>
    %212 = arith.addf %208, %211 : vector<8x1xf32>
    %213 = math.rsqrt %212 : vector<8x1xf32>
    %214 = vector.broadcast %213 : vector<8x1xf32> to vector<8x256xf32>
    %215 = arith.mulf %210, %214 : vector<8x256xf32>
    %216 = vector.broadcast %192 : vector<8x1xf32> to vector<8x256xf32>
    %217 = arith.mulf %215, %216 : vector<8x256xf32>
    %218 = vector.broadcast %194 : vector<8x1xf32> to vector<8x256xf32>
    %219 = arith.addf %217, %218 : vector<8x256xf32>
    %cst_138 = arith.constant 0.000000e+00 : f32
    %220 = vector.broadcast %cst_138 : f32 to vector<8x256xf32>
    %221 = arith.subf %220, %219 : vector<8x256xf32>
    %222 = math.exp %221 : vector<8x256xf32>
    %cst_139 = arith.constant 1.000000e+00 : f32
    %223 = vector.broadcast %cst_139 : f32 to vector<8x256xf32>
    %224 = arith.addf %223, %222 : vector<8x256xf32>
    %225 = tpu.reciprocal %224 {approx = true} : vector<8x256xf32> -> vector<8x256xf32>
    %226 = arith.mulf %219, %225 : vector<8x256xf32>
    %227 = arith.addf %226, %52 : vector<8x256xf32>
    %c1_140 = arith.constant 1 : index
    %c0_141 = arith.constant 0 : index
    %c0_142 = arith.constant 0 : index
    %c0_143 = arith.constant 0 : index
    %228 = vector.load %arg6[%c1_140, %c0_141, %c0_142, %c0_143] : memref<2x2x8x72xbf16, #tpu.memory_space<vmem>>, vector<1x1x8x72xbf16>
    %229 = vector.shape_cast %228 : vector<1x1x8x72xbf16> to vector<8x72xbf16>
    %c7_144 = arith.constant 7 : index
    %c0_145 = arith.constant 0 : index
    %c0_146 = arith.constant 0 : index
    %230 = vector.load %arg7[%c7_144, %c0_145, %c0_146] : memref<13x8x1xf32, #tpu.memory_space<vmem>>, vector<1x8x1xf32>
    %231 = vector.shape_cast %230 : vector<1x8x1xf32> to vector<8x1xf32>
    %c17_i32_147 = arith.constant 17 : i32
    %232 = tpu.dynamic_rotate %227 by %c17_i32_147 dim 1 : vector<8x256xf32>, i32 -> vector<8x256xf32>
    %c0_148 = arith.constant 0 : index
    %c0_149 = arith.constant 0 : index
    %c0_150 = arith.constant 0 : index
    %233 = vector.load %arg4[%c0_148, %c0_149, %c0_150] : memref<9x1x256xf32, #tpu.memory_space<vmem>>, vector<1x1x256xf32>
    %234 = vector.shape_cast %233 : vector<1x1x256xf32> to vector<1x256xf32>
    %235 = vector.broadcast %234 : vector<1x256xf32> to vector<8x256xf32>
    %236 = arith.mulf %232, %235 : vector<8x256xf32>
    %c16_i32_151 = arith.constant 16 : i32
    %237 = tpu.dynamic_rotate %227 by %c16_i32_151 dim 1 : vector<8x256xf32>, i32 -> vector<8x256xf32>
    %c1_152 = arith.constant 1 : index
    %c0_153 = arith.constant 0 : index
    %c0_154 = arith.constant 0 : index
    %238 = vector.load %arg4[%c1_152, %c0_153, %c0_154] : memref<9x1x256xf32, #tpu.memory_space<vmem>>, vector<1x1x256xf32>
    %239 = vector.shape_cast %238 : vector<1x1x256xf32> to vector<1x256xf32>
    %240 = vector.broadcast %239 : vector<1x256xf32> to vector<8x256xf32>
    %241 = arith.mulf %237, %240 : vector<8x256xf32>
    %c15_i32_155 = arith.constant 15 : i32
    %242 = tpu.dynamic_rotate %227 by %c15_i32_155 dim 1 : vector<8x256xf32>, i32 -> vector<8x256xf32>
    %c2_156 = arith.constant 2 : index
    %c0_157 = arith.constant 0 : index
    %c0_158 = arith.constant 0 : index
    %243 = vector.load %arg4[%c2_156, %c0_157, %c0_158] : memref<9x1x256xf32, #tpu.memory_space<vmem>>, vector<1x1x256xf32>
    %244 = vector.shape_cast %243 : vector<1x1x256xf32> to vector<1x256xf32>
    %245 = vector.broadcast %244 : vector<1x256xf32> to vector<8x256xf32>
    %246 = arith.mulf %242, %245 : vector<8x256xf32>
    %c1_i32_159 = arith.constant 1 : i32
    %247 = tpu.dynamic_rotate %227 by %c1_i32_159 dim 1 : vector<8x256xf32>, i32 -> vector<8x256xf32>
    %c3_160 = arith.constant 3 : index
    %c0_161 = arith.constant 0 : index
    %c0_162 = arith.constant 0 : index
    %248 = vector.load %arg4[%c3_160, %c0_161, %c0_162] : memref<9x1x256xf32, #tpu.memory_space<vmem>>, vector<1x1x256xf32>
    %249 = vector.shape_cast %248 : vector<1x1x256xf32> to vector<1x256xf32>
    %250 = vector.broadcast %249 : vector<1x256xf32> to vector<8x256xf32>
    %251 = arith.mulf %247, %250 : vector<8x256xf32>
    %c255_i32_163 = arith.constant 255 : i32
    %252 = tpu.dynamic_rotate %227 by %c255_i32_163 dim 1 : vector<8x256xf32>, i32 -> vector<8x256xf32>
    %c5_164 = arith.constant 5 : index
    %c0_165 = arith.constant 0 : index
    %c0_166 = arith.constant 0 : index
    %253 = vector.load %arg4[%c5_164, %c0_165, %c0_166] : memref<9x1x256xf32, #tpu.memory_space<vmem>>, vector<1x1x256xf32>
    %254 = vector.shape_cast %253 : vector<1x1x256xf32> to vector<1x256xf32>
    %255 = vector.broadcast %254 : vector<1x256xf32> to vector<8x256xf32>
    %256 = arith.mulf %252, %255 : vector<8x256xf32>
    %c241_i32_167 = arith.constant 241 : i32
    %257 = tpu.dynamic_rotate %227 by %c241_i32_167 dim 1 : vector<8x256xf32>, i32 -> vector<8x256xf32>
    %c6_168 = arith.constant 6 : index
    %c0_169 = arith.constant 0 : index
    %c0_170 = arith.constant 0 : index
    %258 = vector.load %arg4[%c6_168, %c0_169, %c0_170] : memref<9x1x256xf32, #tpu.memory_space<vmem>>, vector<1x1x256xf32>
    %259 = vector.shape_cast %258 : vector<1x1x256xf32> to vector<1x256xf32>
    %260 = vector.broadcast %259 : vector<1x256xf32> to vector<8x256xf32>
    %261 = arith.mulf %257, %260 : vector<8x256xf32>
    %c240_i32_171 = arith.constant 240 : i32
    %262 = tpu.dynamic_rotate %227 by %c240_i32_171 dim 1 : vector<8x256xf32>, i32 -> vector<8x256xf32>
    %c7_172 = arith.constant 7 : index
    %c0_173 = arith.constant 0 : index
    %c0_174 = arith.constant 0 : index
    %263 = vector.load %arg4[%c7_172, %c0_173, %c0_174] : memref<9x1x256xf32, #tpu.memory_space<vmem>>, vector<1x1x256xf32>
    %264 = vector.shape_cast %263 : vector<1x1x256xf32> to vector<1x256xf32>
    %265 = vector.broadcast %264 : vector<1x256xf32> to vector<8x256xf32>
    %266 = arith.mulf %262, %265 : vector<8x256xf32>
    %c239_i32_175 = arith.constant 239 : i32
    %267 = tpu.dynamic_rotate %227 by %c239_i32_175 dim 1 : vector<8x256xf32>, i32 -> vector<8x256xf32>
    %c8_176 = arith.constant 8 : index
    %c0_177 = arith.constant 0 : index
    %c0_178 = arith.constant 0 : index
    %268 = vector.load %arg4[%c8_176, %c0_177, %c0_178] : memref<9x1x256xf32, #tpu.memory_space<vmem>>, vector<1x1x256xf32>
    %269 = vector.shape_cast %268 : vector<1x1x256xf32> to vector<1x256xf32>
    %270 = vector.broadcast %269 : vector<1x256xf32> to vector<8x256xf32>
    %271 = arith.mulf %267, %270 : vector<8x256xf32>
    %272 = tpu.concatenate %236, %241, %246, %251, %227, %256, %261, %266, %271 in 0 : vector<8x256xf32>, vector<8x256xf32>, vector<8x256xf32>, vector<8x256xf32>, vector<8x256xf32>, vector<8x256xf32>, vector<8x256xf32>, vector<8x256xf32>, vector<8x256xf32> -> vector<72x256xf32>
    %273 = arith.truncf %272 : vector<72x256xf32> to vector<72x256xbf16>
    %cst_179 = arith.constant dense<0.000000e+00> : vector<8x256xf32>
    %274 = tpu.matmul %229, %273, %cst_179 {dimension_numbers = #tpu.dot_dimension_numbers<[1], [0], [0], [1], [0, 0, 1, 1], [], []>} : vector<8x72xbf16>, vector<72x256xbf16>, vector<8x256xf32> -> vector<8x256xf32>
    %275 = vector.broadcast %231 : vector<8x1xf32> to vector<8x256xf32>
    %276 = arith.addf %274, %275 : vector<8x256xf32>
    %c8_180 = arith.constant 8 : index
    %c0_181 = arith.constant 0 : index
    %c0_182 = arith.constant 0 : index
    %277 = vector.load %arg7[%c8_180, %c0_181, %c0_182] : memref<13x8x1xf32, #tpu.memory_space<vmem>>, vector<1x8x1xf32>
    %278 = vector.shape_cast %277 : vector<1x8x1xf32> to vector<8x1xf32>
    %c9 = arith.constant 9 : index
    %c0_183 = arith.constant 0 : index
    %c0_184 = arith.constant 0 : index
    %279 = vector.load %arg7[%c9, %c0_183, %c0_184] : memref<13x8x1xf32, #tpu.memory_space<vmem>>, vector<1x8x1xf32>
    %280 = vector.shape_cast %279 : vector<1x8x1xf32> to vector<8x1xf32>
    %cst_185 = arith.constant dense<0.000000e+00> : vector<8xf32>
    %281 = vector.multi_reduction <add>, %276, %cst_185 [1] : vector<8x256xf32> to vector<8xf32>
    %282 = vector.shape_cast %281 : vector<8xf32> to vector<8x1xf32>
    %283 = arith.mulf %276, %276 : vector<8x256xf32>
    %cst_186 = arith.constant dense<0.000000e+00> : vector<8xf32>
    %284 = vector.multi_reduction <add>, %283, %cst_186 [1] : vector<8x256xf32> to vector<8xf32>
    %285 = vector.shape_cast %284 : vector<8xf32> to vector<8x1xf32>
    %286 = tpu.concatenate %282, %285 in 1 : vector<8x1xf32>, vector<8x1xf32> -> vector<8x2xf32>
    %c0_187 = arith.constant 0 : index
    %c0_188 = arith.constant 0 : index
    %287 = vector.load %arg8[%c0_187, %c0_188] : memref<8x8xf32, #tpu.memory_space<vmem>>, vector<8x8xf32>
    %cst_189 = arith.constant dense<0.000000e+00> : vector<8x2xf32>
    %288 = tpu.matmul %287, %286, %cst_189 {dimension_numbers = #tpu.dot_dimension_numbers<[1], [0], [0], [1], [0, 0, 1, 1], [], []>} : vector<8x8xf32>, vector<8x2xf32>, vector<8x2xf32> -> vector<8x2xf32>
    %289 = vector.extract_strided_slice %288 {offsets = [0, 0], sizes = [8, 1], strides = [1, 1]} : vector<8x2xf32> to vector<8x1xf32>
    %290 = vector.extract_strided_slice %288 {offsets = [0, 1], sizes = [8, 1], strides = [1, 1]} : vector<8x2xf32> to vector<8x1xf32>
    %291 = arith.mulf %289, %289 : vector<8x1xf32>
    %292 = arith.subf %290, %291 : vector<8x1xf32>
    %cst_190 = arith.constant 0.000000e+00 : f32
    %293 = vector.broadcast %cst_190 : f32 to vector<8x1xf32>
    %294 = arith.maximumf %292, %293 : vector<8x1xf32>
    %295 = vector.broadcast %289 : vector<8x1xf32> to vector<8x256xf32>
    %296 = arith.subf %276, %295 : vector<8x256xf32>
    %cst_191 = arith.constant 9.99999974E-6 : f32
    %297 = vector.broadcast %cst_191 : f32 to vector<8x1xf32>
    %298 = arith.addf %294, %297 : vector<8x1xf32>
    %299 = math.rsqrt %298 : vector<8x1xf32>
    %300 = vector.broadcast %299 : vector<8x1xf32> to vector<8x256xf32>
    %301 = arith.mulf %296, %300 : vector<8x256xf32>
    %302 = vector.broadcast %278 : vector<8x1xf32> to vector<8x256xf32>
    %303 = arith.mulf %301, %302 : vector<8x256xf32>
    %304 = vector.broadcast %280 : vector<8x1xf32> to vector<8x256xf32>
    %305 = arith.addf %303, %304 : vector<8x256xf32>
    %cst_192 = arith.constant 0.000000e+00 : f32
    %306 = vector.broadcast %cst_192 : f32 to vector<8x256xf32>
    %307 = arith.subf %306, %305 : vector<8x256xf32>
    %308 = math.exp %307 : vector<8x256xf32>
    %cst_193 = arith.constant 1.000000e+00 : f32
    %309 = vector.broadcast %cst_193 : f32 to vector<8x256xf32>
    %310 = arith.addf %309, %308 : vector<8x256xf32>
    %311 = tpu.reciprocal %310 {approx = true} : vector<8x256xf32> -> vector<8x256xf32>
    %312 = arith.mulf %305, %311 : vector<8x256xf32>
    %c0_194 = arith.constant 0 : index
    %c1_195 = arith.constant 1 : index
    %c0_196 = arith.constant 0 : index
    %c0_197 = arith.constant 0 : index
    %313 = vector.load %arg2[%c0_194, %c1_195, %c0_196, %c0_197] : memref<1x2x8x1xf32, #tpu.memory_space<vmem>>, vector<1x1x8x1xf32>
    %314 = vector.shape_cast %313 : vector<1x1x8x1xf32> to vector<8x1xf32>
    %315 = vector.broadcast %314 : vector<8x1xf32> to vector<8x256xf32>
    %316 = arith.addf %312, %315 : vector<8x256xf32>
    %c1_198 = arith.constant 1 : index
    %c1_199 = arith.constant 1 : index
    %c0_200 = arith.constant 0 : index
    %c0_201 = arith.constant 0 : index
    %317 = vector.load %arg6[%c1_198, %c1_199, %c0_200, %c0_201] : memref<2x2x8x72xbf16, #tpu.memory_space<vmem>>, vector<1x1x8x72xbf16>
    %318 = vector.shape_cast %317 : vector<1x1x8x72xbf16> to vector<8x72xbf16>
    %c10 = arith.constant 10 : index
    %c0_202 = arith.constant 0 : index
    %c0_203 = arith.constant 0 : index
    %319 = vector.load %arg7[%c10, %c0_202, %c0_203] : memref<13x8x1xf32, #tpu.memory_space<vmem>>, vector<1x8x1xf32>
    %320 = vector.shape_cast %319 : vector<1x8x1xf32> to vector<8x1xf32>
    %c17_i32_204 = arith.constant 17 : i32
    %321 = tpu.dynamic_rotate %316 by %c17_i32_204 dim 1 : vector<8x256xf32>, i32 -> vector<8x256xf32>
    %c0_205 = arith.constant 0 : index
    %c0_206 = arith.constant 0 : index
    %c0_207 = arith.constant 0 : index
    %322 = vector.load %arg4[%c0_205, %c0_206, %c0_207] : memref<9x1x256xf32, #tpu.memory_space<vmem>>, vector<1x1x256xf32>
    %323 = vector.shape_cast %322 : vector<1x1x256xf32> to vector<1x256xf32>
    %324 = vector.broadcast %323 : vector<1x256xf32> to vector<8x256xf32>
    %325 = arith.mulf %321, %324 : vector<8x256xf32>
    %c16_i32_208 = arith.constant 16 : i32
    %326 = tpu.dynamic_rotate %316 by %c16_i32_208 dim 1 : vector<8x256xf32>, i32 -> vector<8x256xf32>
    %c1_209 = arith.constant 1 : index
    %c0_210 = arith.constant 0 : index
    %c0_211 = arith.constant 0 : index
    %327 = vector.load %arg4[%c1_209, %c0_210, %c0_211] : memref<9x1x256xf32, #tpu.memory_space<vmem>>, vector<1x1x256xf32>
    %328 = vector.shape_cast %327 : vector<1x1x256xf32> to vector<1x256xf32>
    %329 = vector.broadcast %328 : vector<1x256xf32> to vector<8x256xf32>
    %330 = arith.mulf %326, %329 : vector<8x256xf32>
    %c15_i32_212 = arith.constant 15 : i32
    %331 = tpu.dynamic_rotate %316 by %c15_i32_212 dim 1 : vector<8x256xf32>, i32 -> vector<8x256xf32>
    %c2_213 = arith.constant 2 : index
    %c0_214 = arith.constant 0 : index
    %c0_215 = arith.constant 0 : index
    %332 = vector.load %arg4[%c2_213, %c0_214, %c0_215] : memref<9x1x256xf32, #tpu.memory_space<vmem>>, vector<1x1x256xf32>
    %333 = vector.shape_cast %332 : vector<1x1x256xf32> to vector<1x256xf32>
    %334 = vector.broadcast %333 : vector<1x256xf32> to vector<8x256xf32>
    %335 = arith.mulf %331, %334 : vector<8x256xf32>
    %c1_i32_216 = arith.constant 1 : i32
    %336 = tpu.dynamic_rotate %316 by %c1_i32_216 dim 1 : vector<8x256xf32>, i32 -> vector<8x256xf32>
    %c3_217 = arith.constant 3 : index
    %c0_218 = arith.constant 0 : index
    %c0_219 = arith.constant 0 : index
    %337 = vector.load %arg4[%c3_217, %c0_218, %c0_219] : memref<9x1x256xf32, #tpu.memory_space<vmem>>, vector<1x1x256xf32>
    %338 = vector.shape_cast %337 : vector<1x1x256xf32> to vector<1x256xf32>
    %339 = vector.broadcast %338 : vector<1x256xf32> to vector<8x256xf32>
    %340 = arith.mulf %336, %339 : vector<8x256xf32>
    %c255_i32_220 = arith.constant 255 : i32
    %341 = tpu.dynamic_rotate %316 by %c255_i32_220 dim 1 : vector<8x256xf32>, i32 -> vector<8x256xf32>
    %c5_221 = arith.constant 5 : index
    %c0_222 = arith.constant 0 : index
    %c0_223 = arith.constant 0 : index
    %342 = vector.load %arg4[%c5_221, %c0_222, %c0_223] : memref<9x1x256xf32, #tpu.memory_space<vmem>>, vector<1x1x256xf32>
    %343 = vector.shape_cast %342 : vector<1x1x256xf32> to vector<1x256xf32>
    %344 = vector.broadcast %343 : vector<1x256xf32> to vector<8x256xf32>
    %345 = arith.mulf %341, %344 : vector<8x256xf32>
    %c241_i32_224 = arith.constant 241 : i32
    %346 = tpu.dynamic_rotate %316 by %c241_i32_224 dim 1 : vector<8x256xf32>, i32 -> vector<8x256xf32>
    %c6_225 = arith.constant 6 : index
    %c0_226 = arith.constant 0 : index
    %c0_227 = arith.constant 0 : index
    %347 = vector.load %arg4[%c6_225, %c0_226, %c0_227] : memref<9x1x256xf32, #tpu.memory_space<vmem>>, vector<1x1x256xf32>
    %348 = vector.shape_cast %347 : vector<1x1x256xf32> to vector<1x256xf32>
    %349 = vector.broadcast %348 : vector<1x256xf32> to vector<8x256xf32>
    %350 = arith.mulf %346, %349 : vector<8x256xf32>
    %c240_i32_228 = arith.constant 240 : i32
    %351 = tpu.dynamic_rotate %316 by %c240_i32_228 dim 1 : vector<8x256xf32>, i32 -> vector<8x256xf32>
    %c7_229 = arith.constant 7 : index
    %c0_230 = arith.constant 0 : index
    %c0_231 = arith.constant 0 : index
    %352 = vector.load %arg4[%c7_229, %c0_230, %c0_231] : memref<9x1x256xf32, #tpu.memory_space<vmem>>, vector<1x1x256xf32>
    %353 = vector.shape_cast %352 : vector<1x1x256xf32> to vector<1x256xf32>
    %354 = vector.broadcast %353 : vector<1x256xf32> to vector<8x256xf32>
    %355 = arith.mulf %351, %354 : vector<8x256xf32>
    %c239_i32_232 = arith.constant 239 : i32
    %356 = tpu.dynamic_rotate %316 by %c239_i32_232 dim 1 : vector<8x256xf32>, i32 -> vector<8x256xf32>
    %c8_233 = arith.constant 8 : index
    %c0_234 = arith.constant 0 : index
    %c0_235 = arith.constant 0 : index
    %357 = vector.load %arg4[%c8_233, %c0_234, %c0_235] : memref<9x1x256xf32, #tpu.memory_space<vmem>>, vector<1x1x256xf32>
    %358 = vector.shape_cast %357 : vector<1x1x256xf32> to vector<1x256xf32>
    %359 = vector.broadcast %358 : vector<1x256xf32> to vector<8x256xf32>
    %360 = arith.mulf %356, %359 : vector<8x256xf32>
    %361 = tpu.concatenate %325, %330, %335, %340, %316, %345, %350, %355, %360 in 0 : vector<8x256xf32>, vector<8x256xf32>, vector<8x256xf32>, vector<8x256xf32>, vector<8x256xf32>, vector<8x256xf32>, vector<8x256xf32>, vector<8x256xf32>, vector<8x256xf32> -> vector<72x256xf32>
    %362 = arith.truncf %361 : vector<72x256xf32> to vector<72x256xbf16>
    %cst_236 = arith.constant dense<0.000000e+00> : vector<8x256xf32>
    %363 = tpu.matmul %318, %362, %cst_236 {dimension_numbers = #tpu.dot_dimension_numbers<[1], [0], [0], [1], [0, 0, 1, 1], [], []>} : vector<8x72xbf16>, vector<72x256xbf16>, vector<8x256xf32> -> vector<8x256xf32>
    %364 = vector.broadcast %320 : vector<8x1xf32> to vector<8x256xf32>
    %365 = arith.addf %363, %364 : vector<8x256xf32>
    %c11 = arith.constant 11 : index
    %c0_237 = arith.constant 0 : index
    %c0_238 = arith.constant 0 : index
    %366 = vector.load %arg7[%c11, %c0_237, %c0_238] : memref<13x8x1xf32, #tpu.memory_space<vmem>>, vector<1x8x1xf32>
    %367 = vector.shape_cast %366 : vector<1x8x1xf32> to vector<8x1xf32>
    %c12 = arith.constant 12 : index
    %c0_239 = arith.constant 0 : index
    %c0_240 = arith.constant 0 : index
    %368 = vector.load %arg7[%c12, %c0_239, %c0_240] : memref<13x8x1xf32, #tpu.memory_space<vmem>>, vector<1x8x1xf32>
    %369 = vector.shape_cast %368 : vector<1x8x1xf32> to vector<8x1xf32>
    %cst_241 = arith.constant dense<0.000000e+00> : vector<8xf32>
    %370 = vector.multi_reduction <add>, %365, %cst_241 [1] : vector<8x256xf32> to vector<8xf32>
    %371 = vector.shape_cast %370 : vector<8xf32> to vector<8x1xf32>
    %372 = arith.mulf %365, %365 : vector<8x256xf32>
    %cst_242 = arith.constant dense<0.000000e+00> : vector<8xf32>
    %373 = vector.multi_reduction <add>, %372, %cst_242 [1] : vector<8x256xf32> to vector<8xf32>
    %374 = vector.shape_cast %373 : vector<8xf32> to vector<8x1xf32>
    %375 = tpu.concatenate %371, %374 in 1 : vector<8x1xf32>, vector<8x1xf32> -> vector<8x2xf32>
    %c0_243 = arith.constant 0 : index
    %c0_244 = arith.constant 0 : index
    %376 = vector.load %arg8[%c0_243, %c0_244] : memref<8x8xf32, #tpu.memory_space<vmem>>, vector<8x8xf32>
    %cst_245 = arith.constant dense<0.000000e+00> : vector<8x2xf32>
    %377 = tpu.matmul %376, %375, %cst_245 {dimension_numbers = #tpu.dot_dimension_numbers<[1], [0], [0], [1], [0, 0, 1, 1], [], []>} : vector<8x8xf32>, vector<8x2xf32>, vector<8x2xf32> -> vector<8x2xf32>
    %378 = vector.extract_strided_slice %377 {offsets = [0, 0], sizes = [8, 1], strides = [1, 1]} : vector<8x2xf32> to vector<8x1xf32>
    %379 = vector.extract_strided_slice %377 {offsets = [0, 1], sizes = [8, 1], strides = [1, 1]} : vector<8x2xf32> to vector<8x1xf32>
    %380 = arith.mulf %378, %378 : vector<8x1xf32>
    %381 = arith.subf %379, %380 : vector<8x1xf32>
    %cst_246 = arith.constant 0.000000e+00 : f32
    %382 = vector.broadcast %cst_246 : f32 to vector<8x1xf32>
    %383 = arith.maximumf %381, %382 : vector<8x1xf32>
    %384 = vector.broadcast %378 : vector<8x1xf32> to vector<8x256xf32>
    %385 = arith.subf %365, %384 : vector<8x256xf32>
    %cst_247 = arith.constant 9.99999974E-6 : f32
    %386 = vector.broadcast %cst_247 : f32 to vector<8x1xf32>
    %387 = arith.addf %383, %386 : vector<8x1xf32>
    %388 = math.rsqrt %387 : vector<8x1xf32>
    %389 = vector.broadcast %388 : vector<8x1xf32> to vector<8x256xf32>
    %390 = arith.mulf %385, %389 : vector<8x256xf32>
    %391 = vector.broadcast %367 : vector<8x1xf32> to vector<8x256xf32>
    %392 = arith.mulf %390, %391 : vector<8x256xf32>
    %393 = vector.broadcast %369 : vector<8x1xf32> to vector<8x256xf32>
    %394 = arith.addf %392, %393 : vector<8x256xf32>
    %cst_248 = arith.constant 0.000000e+00 : f32
    %395 = vector.broadcast %cst_248 : f32 to vector<8x256xf32>
    %396 = arith.subf %395, %394 : vector<8x256xf32>
    %397 = math.exp %396 : vector<8x256xf32>
    %cst_249 = arith.constant 1.000000e+00 : f32
    %398 = vector.broadcast %cst_249 : f32 to vector<8x256xf32>
    %399 = arith.addf %398, %397 : vector<8x256xf32>
    %400 = tpu.reciprocal %399 {approx = true} : vector<8x256xf32> -> vector<8x256xf32>
    %401 = arith.mulf %394, %400 : vector<8x256xf32>
    %402 = arith.addf %401, %227 : vector<8x256xf32>
    %c0_250 = arith.constant 0 : index
    %c0_251 = arith.constant 0 : index
    %c0_252 = arith.constant 0 : index
    %403 = vector.load %arg9[%c0_250, %c0_251, %c0_252] : memref<1x8x256xf32, #tpu.memory_space<vmem>>, vector<1x8x256xf32>
    %404 = vector.shape_cast %403 : vector<1x8x256xf32> to vector<8x256xf32>
    %405 = vector.shape_cast %402 : vector<8x256xf32> to vector<1x8x256xf32>
    tpu.vector_store %arg9[%c0_250, %c0_251, %c0_252], %405 {strides = array<i32>} : memref<1x8x256xf32, #tpu.memory_space<vmem>>, vector<1x8x256xf32>,
    return
  }
  func.func @transform_0(%arg0: i32) -> (i32, i32, i32) {
    %c0_i32 = arith.constant 0 : i32
    %c0_i32_0 = arith.constant 0 : i32
    %c0_i32_1 = arith.constant 0 : i32
    return %arg0, %c0_i32, %c0_i32_0 : i32, i32, i32
  }
  func.func @transform_1(%arg0: i32) -> (i32, i32, i32, i32) {
    %c0_i32 = arith.constant 0 : i32
    %c0_i32_0 = arith.constant 0 : i32
    %c0_i32_1 = arith.constant 0 : i32
    %c0_i32_2 = arith.constant 0 : i32
    return %arg0, %c0_i32, %c0_i32_0, %c0_i32_1 : i32, i32, i32, i32
  }
  func.func @transform_2(%arg0: i32) -> (i32, i32) {
    %c0_i32 = arith.constant 0 : i32
    %c0_i32_0 = arith.constant 0 : i32
    %c0_i32_1 = arith.constant 0 : i32
    return %c0_i32, %c0_i32_0 : i32, i32
  }
  func.func @transform_3(%arg0: i32) -> (i32, i32, i32) {
    %c0_i32 = arith.constant 0 : i32
    %c0_i32_0 = arith.constant 0 : i32
    %c0_i32_1 = arith.constant 0 : i32
    %c0_i32_2 = arith.constant 0 : i32
    return %c0_i32, %c0_i32_0, %c0_i32_1 : i32, i32, i32
  }
  func.func @transform_4(%arg0: i32) -> (i32, i32) {
    %c0_i32 = arith.constant 0 : i32
    %c0_i32_0 = arith.constant 0 : i32
    %c0_i32_1 = arith.constant 0 : i32
    return %c0_i32, %c0_i32_0 : i32, i32
  }
  func.func @transform_5(%arg0: i32) -> (i32, i32, i32, i32) {
    %c0_i32 = arith.constant 0 : i32
    %c0_i32_0 = arith.constant 0 : i32
    %c0_i32_1 = arith.constant 0 : i32
    %c0_i32_2 = arith.constant 0 : i32
    %c0_i32_3 = arith.constant 0 : i32
    return %c0_i32, %c0_i32_0, %c0_i32_1, %c0_i32_2 : i32, i32, i32, i32
  }
  func.func @transform_6(%arg0: i32) -> (i32, i32, i32) {
    %c0_i32 = arith.constant 0 : i32
    %c0_i32_0 = arith.constant 0 : i32
    %c0_i32_1 = arith.constant 0 : i32
    %c0_i32_2 = arith.constant 0 : i32
    return %c0_i32, %c0_i32_0, %c0_i32_1 : i32, i32, i32
  }
  func.func @transform_7(%arg0: i32) -> (i32, i32) {
    %c0_i32 = arith.constant 0 : i32
    %c0_i32_0 = arith.constant 0 : i32
    %c0_i32_1 = arith.constant 0 : i32
    return %c0_i32, %c0_i32_0 : i32, i32
  }
  func.func @transform_8(%arg0: i32) -> (i32, i32, i32) {
    %c0_i32 = arith.constant 0 : i32
    %c0_i32_0 = arith.constant 0 : i32
    %c0_i32_1 = arith.constant 0 : i32
    return %arg0, %c0_i32, %c0_i32_0 : i32, i32, i32
  }
}

</mosaic_0001>

<llo_original>
// kernel: decoder_forward.1
$region0: #{decoder_forward.1}
  #allocation0 [shape = 'u32[]', space=smem, size = 0x4, offset = 0x4, fixed_abs, tag = 'smem constant byte address 0x4 - core index']
  #allocation1 [shape = 'u32[144,128]{1,0:T(1,128)}', space=vmem, size = 0x12000, scoped, tag = 'internal scratch']
  %s0 = inlined_call_operand.vmem [shape: f32[2,16,64], index: 0, kind: input, shape index: {}]
  %s1 = inlined_call_operand.vmem [shape: f32[2,2,8,1], index: 1, kind: input, shape index: {}]
  %s2 = inlined_call_operand.vmem [shape: bf16[64,256], index: 2, kind: input, shape index: {}]
  %s3 = inlined_call_operand.vmem [shape: f32[9,1,256], index: 3, kind: input, shape index: {}]
  %s4 = inlined_call_operand.vmem [shape: bf16[8,144], index: 4, kind: input, shape index: {}]
  %s5 = inlined_call_operand.vmem [shape: bf16[2,2,8,72], index: 5, kind: input, shape index: {}]
  %s6 = inlined_call_operand.vmem [shape: f32[13,8,1], index: 6, kind: input, shape index: {}]
  %s7 = inlined_call_operand.vmem [shape: f32[8,8], index: 7, kind: input, shape index: {}]
  %s8 = inlined_call_operand.vmem [shape: f32[2,8,256], index: 8, kind: output, shape index: {}]
  %s9 = sld [smem:[#allocation0]]
  $region65: #{decoder_forward.1} parent=0
    _
  %s11 = ssub.s32 1, %s9
  %s12 = scalar_select 0, %s11, %s9
  loop: start=0, step=1, limit=4
  $region2: #{decoder_forward.1} parent=0 // loop_pre_header
    _
  $region3: #{decoder_forward.1} parent=0 // loop_header
    %s14 = sphi 0, %s18
    %p15 = scmp.ge.s32.totalorder %s14, 4
    %s24 = sphi 0, %s26
    %s27 = sphi 0, %s24
    %s28 = sphi 0, %s27
    %s44 = sphi 0, %s28
    %s50 = sphi 0, %s52
    %s53 = sphi 0, %s50
    %s54 = sphi 0, %s53
    %s70 = sphi 0, %s54
    %s74 = sphi 0, %s74
    %s76 = sphi 0, %s74
    %s77 = sphi 0, %s76
    %s91 = sphi 0, %s77
    %s95 = sphi 0, %s95
    %s97 = sphi 0, %s95
    %s98 = sphi 0, %s97
    %s112 = sphi 0, %s98
    %s116 = sphi 0, %s116
    %s118 = sphi 0, %s116
    %s119 = sphi 0, %s118
    %s133 = sphi 0, %s119
    %s137 = sphi 0, %s137
    %s139 = sphi 0, %s137
    %s140 = sphi 0, %s139
    %s154 = sphi 0, %s140
    %s158 = sphi 0, %s158
    %s160 = sphi 0, %s158
    %s161 = sphi 0, %s160
    %s175 = sphi 0, %s161
    %s179 = sphi 0, %s179
    %s181 = sphi 0, %s179
    %s182 = sphi 0, %s181
    %s196 = sphi 0, %s182
    %s202 = sphi 0, %s204
    %s205 = sphi 0, %s202
    %s206 = sphi 0, %s205
    %s222 = sphi 0, %s206
  $region4: #{decoder_forward.1} parent=0 // loop_header_branch
    %17 = sbr.rel (%p15) target = $region8
  $region5: #{decoder_forward.1} parent=0 // loop_body
    %s19 = ssub.s32 %s14, 1
    %s20 = ssub.s32 %s14, 2
    %s21 = sadd.s32 %s14, 1
    %s22 = ssub.s32 %s14, %s21
    %p23 = scmp.eq.s32.totalorder %s22, 0
    %s25 = sadd.s32 %s24, 1
    %s26 = scalar_select %p23, %s24, %s25
    %p29 = pneg %p23
    %p30 = scmp.eq.s32.totalorder %s14, 1
    %p31 = por %p29, %p30
    %p32 = scmp.ne.s32.totalorder %s24, %s27
    %p33 = scmp.eq.s32.totalorder %s14, 0
    %p34 = por %p32, %p33
    %p35 = scmp.ne.s32.totalorder %s24, %s27
    %p36 = scmp.eq.s32.totalorder %s19, 1
    %p37 = por %p35, %p36
    %p38 = scmp.ne.s32.totalorder %s27, %s28
    %p39 = scmp.eq.s32.totalorder %s19, 0
    %p40 = por %p38, %p39
    %p41 = scmp.ne.s32.totalorder %s27, %s28
    %p42 = scmp.eq.s32.totalorder %s20, 1
    %p43 = por %p41, %p42
    %p45 = scmp.ne.s32.totalorder %s28, %s44
    %p46 = scmp.eq.s32.totalorder %s20, 0
    %p47 = por %p45, %p46
    %s48 = ssub.s32 %s14, %s21
    %p49 = scmp.eq.s32.totalorder %s48, 0
    %s51 = sadd.s32 %s50, 1
    %s52 = scalar_select %p49, %s50, %s51
    %p55 = pneg %p49
    %p56 = scmp.eq.s32.totalorder %s14, 1
    %p57 = por %p55, %p56
    %p58 = scmp.ne.s32.totalorder %s50, %s53
    %p59 = scmp.eq.s32.totalorder %s14, 0
    %p60 = por %p58, %p59
    %p61 = scmp.ne.s32.totalorder %s50, %s53
    %p62 = scmp.eq.s32.totalorder %s19, 1
    %p63 = por %p61, %p62
    %p64 = scmp.ne.s32.totalorder %s53, %s54
    %p65 = scmp.eq.s32.totalorder %s19, 0
    %p66 = por %p64, %p65
    %p67 = scmp.ne.s32.totalorder %s53, %s54
    %p68 = scmp.eq.s32.totalorder %s20, 1
    %p69 = por %p67, %p68
    %p71 = scmp.ne.s32.totalorder %s54, %s70
    %p72 = scmp.eq.s32.totalorder %s20, 0
    %p73 = por %p71, %p72
    %s75 = sadd.s32 %s74, 1
    %p78 = scmp.eq.s32.totalorder %s14, 1
    %p79 = scmp.ne.s32.totalorder %s74, %s76
    %p80 = scmp.eq.s32.totalorder %s14, 0
    %p81 = por %p79, %p80
    %p82 = scmp.ne.s32.totalorder %s74, %s76
    %p83 = scmp.eq.s32.totalorder %s19, 1
    %p84 = por %p82, %p83
    %p85 = scmp.ne.s32.totalorder %s76, %s77
    %p86 = scmp.eq.s32.totalorder %s19, 0
    %p87 = por %p85, %p86
    %p88 = scmp.ne.s32.totalorder %s76, %s77
    %p89 = scmp.eq.s32.totalorder %s20, 1
    %p90 = por %p88, %p89
    %p92 = scmp.ne.s32.totalorder %s77, %s91
    %p93 = scmp.eq.s32.totalorder %s20, 0
    %p94 = por %p92, %p93
    %s96 = sadd.s32 %s95, 1
    %p99 = scmp.eq.s32.totalorder %s14, 1
    %p100 = scmp.ne.s32.totalorder %s95, %s97
    %p101 = scmp.eq.s32.totalorder %s14, 0
    %p102 = por %p100, %p101
    %p103 = scmp.ne.s32.totalorder %s95, %s97
    %p104 = scmp.eq.s32.totalorder %s19, 1
    %p105 = por %p103, %p104
    %p106 = scmp.ne.s32.totalorder %s97, %s98
    %p107 = scmp.eq.s32.totalorder %s19, 0
    %p108 = por %p106, %p107
    %p109 = scmp.ne.s32.totalorder %s97, %s98
    %p110 = scmp.eq.s32.totalorder %s20, 1
    %p111 = por %p109, %p110
    %p113 = scmp.ne.s32.totalorder %s98, %s112
    %p114 = scmp.eq.s32.totalorder %s20, 0
    %p115 = por %p113, %p114
    %s117 = sadd.s32 %s116, 1
    %p120 = scmp.eq.s32.totalorder %s14, 1
    %p121 = scmp.ne.s32.totalorder %s116, %s118
    %p122 = scmp.eq.s32.totalorder %s14, 0
    %p123 = por %p121, %p122
    %p124 = scmp.ne.s32.totalorder %s116, %s118
    %p125 = scmp.eq.s32.totalorder %s19, 1
    %p126 = por %p124, %p125
    %p127 = scmp.ne.s32.totalorder %s118, %s119
    %p128 = scmp.eq.s32.totalorder %s19, 0
    %p129 = por %p127, %p128
    %p130 = scmp.ne.s32.totalorder %s118, %s119
    %p131 = scmp.eq.s32.totalorder %s20, 1
    %p132 = por %p130, %p131
    %p134 = scmp.ne.s32.totalorder %s119, %s133
    %p135 = scmp.eq.s32.totalorder %s20, 0
    %p136 = por %p134, %p135
    %s138 = sadd.s32 %s137, 1
    %p141 = scmp.eq.s32.totalorder %s14, 1
    %p142 = scmp.ne.s32.totalorder %s137, %s139
    %p143 = scmp.eq.s32.totalorder %s14, 0
    %p144 = por %p142, %p143
    %p145 = scmp.ne.s32.totalorder %s137, %s139
    %p146 = scmp.eq.s32.totalorder %s19, 1
    %p147 = por %p145, %p146
    %p148 = scmp.ne.s32.totalorder %s139, %s140
    %p149 = scmp.eq.s32.totalorder %s19, 0
    %p150 = por %p148, %p149
    %p151 = scmp.ne.s32.totalorder %s139, %s140
    %p152 = scmp.eq.s32.totalorder %s20, 1
    %p153 = por %p151, %p152
    %p155 = scmp.ne.s32.totalorder %s140, %s154
    %p156 = scmp.eq.s32.totalorder %s20, 0
    %p157 = por %p155, %p156
    %s159 = sadd.s32 %s158, 1
    %p162 = scmp.eq.s32.totalorder %s14, 1
    %p163 = scmp.ne.s32.totalorder %s158, %s160
    %p164 = scmp.eq.s32.totalorder %s14, 0
    %p165 = por %p163, %p164
    %p166 = scmp.ne.s32.totalorder %s158, %s160
    %p167 = scmp.eq.s32.totalorder %s19, 1
    %p168 = por %p166, %p167
    %p169 = scmp.ne.s32.totalorder %s160, %s161
    %p170 = scmp.eq.s32.totalorder %s19, 0
    %p171 = por %p169, %p170
    %p172 = scmp.ne.s32.totalorder %s160, %s161
    %p173 = scmp.eq.s32.totalorder %s20, 1
    %p174 = por %p172, %p173
    %p176 = scmp.ne.s32.totalorder %s161, %s175
    %p177 = scmp.eq.s32.totalorder %s20, 0
    %p178 = por %p176, %p177
    %s180 = sadd.s32 %s179, 1
    %p183 = scmp.eq.s32.totalorder %s14, 1
    %p184 = scmp.ne.s32.totalorder %s179, %s181
    %p185 = scmp.eq.s32.totalorder %s14, 0
    %p186 = por %p184, %p185
    %p187 = scmp.ne.s32.totalorder %s179, %s181
    %p188 = scmp.eq.s32.totalorder %s19, 1
    %p189 = por %p187, %p188
    %p190 = scmp.ne.s32.totalorder %s181, %s182
    %p191 = scmp.eq.s32.totalorder %s19, 0
    %p192 = por %p190, %p191
    %p193 = scmp.ne.s32.totalorder %s181, %s182
    %p194 = scmp.eq.s32.totalorder %s20, 1
    %p195 = por %p193, %p194
    %p197 = scmp.ne.s32.totalorder %s182, %s196
    %p198 = scmp.eq.s32.totalorder %s20, 0
    %p199 = por %p197, %p198
    %s200 = ssub.s32 %s14, %s21
    %p201 = scmp.eq.s32.totalorder %s200, 0
    %s203 = sadd.s32 %s202, 1
    %s204 = scalar_select %p201, %s202, %s203
    %p207 = pneg %p201
    %p208 = scmp.eq.s32.totalorder %s14, 1
    %p209 = por %p207, %p208
    %p210 = scmp.ne.s32.totalorder %s202, %s205
    %p211 = scmp.eq.s32.totalorder %s14, 0
    %p212 = por %p210, %p211
    %p213 = scmp.ne.s32.totalorder %s202, %s205
    %p214 = scmp.eq.s32.totalorder %s19, 1
    %p215 = por %p213, %p214
    %p216 = scmp.ne.s32.totalorder %s205, %s206
    %p217 = scmp.eq.s32.totalorder %s19, 0
    %p218 = por %p216, %p217
    %p219 = scmp.ne.s32.totalorder %s205, %s206
    %p220 = scmp.eq.s32.totalorder %s20, 1
    %p221 = por %p219, %p220
    %p223 = scmp.ne.s32.totalorder %s206, %s222
    %p224 = scmp.eq.s32.totalorder %s20, 0
    %p225 = por %p223, %p224
    %p226 = scmp.le.s32.totalorder 1, %s14
    %p227 = scmp.lt.s32.totalorder %s14, 3
    %p228 = pnand %p226, %p227
    %p229 = pneg %p228
    // Predicated region
    $region9: #{decoder_forward.1} parent=5 // pred_check
      _
    $region10: #{decoder_forward.1} parent=5 // pred_check_branch
      %231 = sbr.rel (%p228) target = $region12
    $region11: #{decoder_forward.1} parent=5 // pred_region
      %s232 = ssub.s32 %s14, 1
      // Predicated region
      $region13: #{decoder_forward.1} parent=11 // pred_check
        %p233 = pneg %p87
      $region14: #{decoder_forward.1} parent=11 // pred_check_branch
        %235 = sbr.rel (%p233) target = $region16
      $region15: #{decoder_forward.1} parent=11 // pred_region
        _
      $region16: #{decoder_forward.1} parent=11 // pred_fallthru
        _
      // Predicated region
      $region17: #{decoder_forward.1} parent=11 // pred_check
        %p236 = pneg %p108
      $region18: #{decoder_forward.1} parent=11 // pred_check_branch
        %238 = sbr.rel (%p236) target = $region20
      $region19: #{decoder_forward.1} parent=11 // pred_region
        _
      $region20: #{decoder_forward.1} parent=11 // pred_fallthru
        _
      // Predicated region
      $region21: #{decoder_forward.1} parent=11 // pred_check
        %p239 = pneg %p129
      $region22: #{decoder_forward.1} parent=11 // pred_check_branch
        %241 = sbr.rel (%p239) target = $region24
      $region23: #{decoder_forward.1} parent=11 // pred_region
        _
      $region24: #{decoder_forward.1} parent=11 // pred_fallthru
        _
      // Predicated region
      $region25: #{decoder_forward.1} parent=11 // pred_check
        %p242 = pneg %p150
      $region26: #{decoder_forward.1} parent=11 // pred_check_branch
        %244 = sbr.rel (%p242) target = $region28
      $region27: #{decoder_forward.1} parent=11 // pred_region
        _
      $region28: #{decoder_forward.1} parent=11 // pred_fallthru
        _
      // Predicated region
      $region29: #{decoder_forward.1} parent=11 // pred_check
        %p245 = pneg %p171
      $region30: #{decoder_forward.1} parent=11 // pred_check_branch
        %247 = sbr.rel (%p245) target = $region32
      $region31: #{decoder_forward.1} parent=11 // pred_region
        _
      $region32: #{decoder_forward.1} parent=11 // pred_fallthru
        _
      // Predicated region
      $region33: #{decoder_forward.1} parent=11 // pred_check
        %p248 = pneg %p192
      $region34: #{decoder_forward.1} parent=11 // pred_check_branch
        %250 = sbr.rel (%p248) target = $region36
      $region35: #{decoder_forward.1} parent=11 // pred_region
        _
      $region36: #{decoder_forward.1} parent=11 // pred_fallthru
        _
    $region12: #{decoder_forward.1} parent=5 // pred_fallthru
      _
    %p251 = scmp.lt.s32.totalorder %s14, 2
    // Predicated region
    $region37: #{decoder_forward.1} parent=5 // pred_check
      %p252 = pneg %p251
    $region38: #{decoder_forward.1} parent=5 // pred_check_branch
      %254 = sbr.rel (%p252) target = $region40
    $region39: #{decoder_forward.1} parent=5 // pred_region
      // Predicated region
      $region41: #{decoder_forward.1} parent=39 // pred_check
        %p255 = pneg %p34
      $region42: #{decoder_forward.1} parent=39 // pred_check_branch
        %257 = sbr.rel (%p255) target = $region44
      $region43: #{decoder_forward.1} parent=39 // pred_region
        %p258 = scmp.lt.s32.totalorder %s14, 1
        %s259 = scalar_select %p258, %s14, 1
        %s260 = smul.addr %s259, 2
        %s261 = smul.addr %s260, 8
        %s262 = scalar_lea.vmem %s0, %s261
      $region44: #{decoder_forward.1} parent=39 // pred_fallthru
        _
      // Predicated region
      $region45: #{decoder_forward.1} parent=39 // pred_check
        %p263 = pneg %p60
      $region46: #{decoder_forward.1} parent=39 // pred_check_branch
        %265 = sbr.rel (%p263) target = $region48
      $region47: #{decoder_forward.1} parent=39 // pred_region
        %p266 = scmp.lt.s32.totalorder %s14, 1
        %s267 = scalar_select %p266, %s14, 1
        %s268 = smul.addr %s267, 2
        %s269 = smul.addr %s268, 8
        %s270 = scalar_lea.vmem %s1, %s269
      $region48: #{decoder_forward.1} parent=39 // pred_fallthru
        _
    $region40: #{decoder_forward.1} parent=5 // pred_fallthru
      _
    %p271 = scmp.le.s32.totalorder 1, %s14
    %p272 = scmp.lt.s32.totalorder %s14, 3
    %p273 = pnand %p271, %p272
    %p274 = pneg %p273
    // Predicated region
    $region49: #{decoder_forward.1} parent=5 // pred_check
      _
    $region50: #{decoder_forward.1} parent=5 // pred_check_branch
      %276 = sbr.rel (%p273) target = $region52
    $region51: #{decoder_forward.1} parent=5 // pred_region
      %s277 = ssub.s32 %s14, 1
      %p278 = scmp.lt.s32.totalorder %s19, 1
      %s279 = scalar_select %p278, %s19, 1
      %s280 = smul.addr %s279, 2
      %s281 = smul.addr %s280, 8
      %s282 = scalar_lea.vmem %s0, %s281
      %p283 = pneg %p40
      %p284 = pneg %p37
      %p285 = scmp.lt.s32.totalorder %s19, 1
      %s286 = scalar_select %p285, %s19, 1
      %s287 = smul.addr %s286, 2
      %s288 = smul.addr %s287, 8
      %s289 = scalar_lea.vmem %s1, %s288
      %p290 = pneg %p66
      %p291 = pneg %p63
      %p292 = pneg %p87
      %p293 = pneg %p84
      %p294 = pneg %p108
      %p295 = pneg %p105
      %p296 = pneg %p129
      %p297 = pneg %p126
      %p298 = pneg %p150
      %p299 = pneg %p147
      %p300 = pneg %p171
      %p301 = pneg %p168
      %p302 = pneg %p192
      %p303 = pneg %p189
      %p304 = pneg %p218
      %p305 = pneg %p215
      %p306 = scmp.lt.s32.totalorder %s19, 1
      %s307 = scalar_select %p306, %s19, 1
      %s308 = smul.addr %s307, 2
      %s309 = smul.addr %s308, 8
      %s310 = scalar_lea.vmem %s8, %s309
      %p311 = scmp.lt.s32.totalorder %s19, 1
      %s312 = scalar_select %p311, %s19, 1
      %s313 = smul.addr %s312, 2
      %s314 = smul.addr %s313, 8
      %s315 = scalar_lea.vmem %s0, %s314
      %p316 = scmp.lt.s32.totalorder %s19, 1
      %s317 = scalar_select %p316, %s19, 1
      %s318 = smul.addr %s317, 2
      %s319 = smul.addr %s318, 8
      %s320 = scalar_lea.vmem %s1, %s319
      %p321 = scmp.lt.s32.totalorder %s19, 1
      %s322 = scalar_select %p321, %s19, 1
      %s323 = smul.addr %s322, 2
      %s324 = smul.addr %s323, 8
      %s325 = scalar_lea.vmem %s8, %s324
      %v327 = vld [vmem:[%s315] sm:$0xff]
      %v328 = vld [vmem:[%s315 + $0x8] sm:$0xff]
      %v329 = vpack.c.bf16 %v328, %v327
      %v330 = vld [vmem:[%s2] sm:$0xff]
      %v331 = vld [vmem:[%s2 + $0x8] sm:$0xff]
      %v332 = vld [vmem:[%s2 + $0x10] sm:$0xff]
      %v333 = vld [vmem:[%s2 + $0x18] sm:$0xff]
      %v334 = vld [vmem:[%s2 + $0x20] sm:$0xff]
      %v335 = vld [vmem:[%s2 + $0x28] sm:$0xff]
      %v336 = vld [vmem:[%s2 + $0x30] sm:$0xff]
      %v337 = vld [vmem:[%s2 + $0x38] sm:$0xff]
      %v346 = vunpack.c.l.b16 %v330
      %v347 = vunpack.c.h.b16 %v330
      %v348 = vunpack.c.l.b16 %v331
      %v349 = vunpack.c.h.b16 %v331
      %v350 = vunpack.c.l.b16 %v332
      %v351 = vunpack.c.h.b16 %v332
      %v352 = vunpack.c.l.b16 %v333
      %v353 = vunpack.c.h.b16 %v333
      %v354 = vunpack.c.l.b16 %v334
      %v355 = vunpack.c.h.b16 %v334
      %v356 = vunpack.c.l.b16 %v335
      %v357 = vunpack.c.h.b16 %v335
      %v358 = vunpack.c.l.b16 %v336
      %v359 = vunpack.c.h.b16 %v336
      %v360 = vunpack.c.l.b16 %v337
      %v361 = vunpack.c.h.b16 %v337
      %v362 = vpack.c.b16 %v348, %v346
      %v363 = vpack.c.b16 %v349, %v347
      %v364 = vpack.c.b16 %v352, %v350
      %v365 = vpack.c.b16 %v353, %v351
      %v366 = vpack.c.b16 %v356, %v354
      %v367 = vpack.c.b16 %v357, %v355
      %v368 = vpack.c.b16 %v360, %v358
      %v369 = vpack.c.b16 %v361, %v359
      %vm378 = vcmask 523264
      %v380 = vsel %vm378, %v329, 0
      %382 = vmatprep.subr.bf16.mxu0 0
      %383 = vmatpush1.bf16.msra.mxu0 0
      %384 = vmatprep.subr.bf16.mxu0 0
      %385 = vmatpush1.bf16.msra.mxu0 0
      %386 = vmatprep.subr.bf16.mxu0 0
      %387 = vmatpush1.bf16.msra.mxu0 0
      %388 = vmatprep.subr.bf16.mxu0 0
      %389 = vmatpush1.bf16.msra.mxu0 0
      %390 = vmatprep.subr.bf16.mxu0 %v369
      %391 = vmatpush1.bf16.msra.mxu0 %v368
      %392 = vmatprep.subr.bf16.mxu0 %v367
      %393 = vmatpush1.bf16.msra.mxu0 %v366
      %394 = vmatprep.subr.bf16.mxu0 %v365
      %395 = vmatpush1.bf16.msra.mxu0 %v364
      %396 = vmatprep.subr.bf16.mxu0 %v363
      %397 = vmatpush1.bf16.msra.mxu0 %v362
      %398 = vmatprep.subr.bf16.mxu0 0
      %399 = vmatpush2.bf16.msra.mxu0 0
      %400 = vmatprep.subr.bf16.mxu0 0
      %401 = vmatpush2.bf16.msra.mxu0 0
      %402 = vmatprep.subr.bf16.mxu0 0
      %403 = vmatpush2.bf16.msra.mxu0 0
      %404 = vmatprep.subr.bf16.mxu0 0
      %405 = vmatpush2.bf16.msra.mxu0 0
      %406 = vmatprep.subr.bf16.mxu0 0
      %407 = vmatpush2.bf16.msra.mxu0 0
      %408 = vmatprep.subr.bf16.mxu0 0
      %409 = vmatpush2.bf16.msra.mxu0 0
      %410 = vmatprep.subr.bf16.mxu0 0
      %411 = vmatpush2.bf16.msra.mxu0 0
      %412 = vmatprep.subr.bf16.mxu0 0
      %413 = vmatpush2.bf16.msra.mxu0 0
      %414 = vmatprep.mubr.bf16.mxu0 0
      %415 = vmatmul.mubr.bf16.gmra.mxu0 %v380
      %v416 = vpop.f32.mrf.mxu0
      %v417 = vadd.f32 0.0, %v416
      %v418 = vpop.f32.mrf.mxu0
      %v419 = vadd.f32 0.0, %v418
      %v420 = vpop.f32.mrf.mxu0
      %v421 = vadd.f32 0.0, %v420
      %v422 = vpop.f32.mrf.mxu0
      %v423 = vadd.f32 0.0, %v422
      %424 = vdwg.mxu0
      %v425 = vld [vmem:[%s4] sm:$0xff]
      %v426 = vld [vmem:[%s6] sm:$0xff]
      %427 = vrot.lane.b32.xlu0 %v417, 17
      %v428 = vpop.permute.xlu0 %427
      %429 = vrot.lane.b32.xlu0 %v421, 17
      %v430 = vpop.permute.xlu0 %429
      %431 = vrot.lane.b32.xlu0 %v419, 17
      %v432 = vpop.permute.xlu0 %431
      %433 = vrot.lane.b32.xlu0 %v423, 17
      %v434 = vpop.permute.xlu0 %433
      %v435 = vlaneseq
      %v436 = vand.u32 %v435, 127
      %vm437 = vcmp.lt.s32.totalorder %v436, 17
      %v438 = vsel %vm437, %v428, %v432
      %v439 = vsel %vm437, %v430, %v434
      %v440 = vsel %vm437, %v432, %v428
      %v441 = vsel %vm437, %v434, %v430
      %v442 = vld [vmem:[%s3] sm:$0x3]
      %v444 = vlaneseq
      %v445 = vshrl.u32 %v444, 7
      %v446 = vsub.s32 0, %v445
      %v447 = vrot.slane %v442, %v446
      %v448 = vlaneseq
      %v449 = vshrl.u32 %v448, 7
      %v450 = vsub.s32 1, %v449
      %v451 = vrot.slane %v442, %v450
      %v454 = vmul.f32 %v440, %v447
      %v455 = vmul.f32 %v438, %v451
      %v456 = vmul.f32 %v441, %v447
      %v457 = vmul.f32 %v439, %v451
      %458 = vrot.lane.b32.xlu0 %v417, 16
      %v459 = vpop.permute.xlu0 %458
      %460 = vrot.lane.b32.xlu0 %v421, 16
      %v461 = vpop.permute.xlu0 %460
      %462 = vrot.lane.b32.xlu0 %v419, 16
      %v463 = vpop.permute.xlu0 %462
      %464 = vrot.lane.b32.xlu0 %v423, 16
      %v465 = vpop.permute.xlu0 %464
      %vm466 = vcmp.lt.s32.totalorder %v436, 16
      %v467 = vsel %vm466, %v459, %v463
      %v468 = vsel %vm466, %v461, %v465
      %v469 = vsel %vm466, %v463, %v459
      %v470 = vsel %vm466, %v465, %v461
      %s471 = scalar_lea.vmem %s3, 2
      %v472 = vld [vmem:[%s471] sm:$0x3]
      %v474 = vlaneseq
      %v475 = vshrl.u32 %v474, 7
      %v476 = vsub.s32 0, %v475
      %v477 = vrot.slane %v472, %v476
      %v478 = vlaneseq
      %v479 = vshrl.u32 %v478, 7
      %v480 = vsub.s32 1, %v479
      %v481 = vrot.slane %v472, %v480
      %v484 = vmul.f32 %v469, %v477
      %v485 = vmul.f32 %v467, %v481
      %v486 = vmul.f32 %v470, %v477
      %v487 = vmul.f32 %v468, %v481
      %488 = vrot.lane.b32.xlu0 %v417, 15
      %v489 = vpop.permute.xlu0 %488
      %490 = vrot.lane.b32.xlu0 %v421, 15
      %v491 = vpop.permute.xlu0 %490
      %492 = vrot.lane.b32.xlu0 %v419, 15
      %v493 = vpop.permute.xlu0 %492
      %494 = vrot.lane.b32.xlu0 %v423, 15
      %v495 = vpop.permute.xlu0 %494
      %vm496 = vcmp.lt.s32.totalorder %v436, 15
      %v497 = vsel %vm496, %v489, %v493
      %v498 = vsel %vm496, %v491, %v495
      %v499 = vsel %vm496, %v493, %v489
      %v500 = vsel %vm496, %v495, %v491
      %s501 = scalar_lea.vmem %s3, 4
      %v502 = vld [vmem:[%s501] sm:$0x3]
      %v504 = vlaneseq
      %v505 = vshrl.u32 %v504, 7
      %v506 = vsub.s32 0, %v505
      %v507 = vrot.slane %v502, %v506
      %v508 = vlaneseq
      %v509 = vshrl.u32 %v508, 7
      %v510 = vsub.s32 1, %v509
      %v511 = vrot.slane %v502, %v510
      %v514 = vmul.f32 %v499, %v507
      %v515 = vmul.f32 %v497, %v511
      %v516 = vmul.f32 %v500, %v507
      %v517 = vmul.f32 %v498, %v511
      %518 = vrot.lane.b32.xlu0 %v417, 1
      %v519 = vpop.permute.xlu0 %518
      %520 = vrot.lane.b32.xlu0 %v421, 1
      %v521 = vpop.permute.xlu0 %520
      %522 = vrot.lane.b32.xlu0 %v419, 1
      %v523 = vpop.permute.xlu0 %522
      %524 = vrot.lane.b32.xlu0 %v423, 1
      %v525 = vpop.permute.xlu0 %524
      %vm526 = vcmp.lt.s32.totalorder %v436, 1
      %v527 = vsel %vm526, %v519, %v523
      %v528 = vsel %vm526, %v521, %v525
      %v529 = vsel %vm526, %v523, %v519
      %v530 = vsel %vm526, %v525, %v521
      %s531 = scalar_lea.vmem %s3, 6
      %v532 = vld [vmem:[%s531] sm:$0x3]
      %v534 = vlaneseq
      %v535 = vshrl.u32 %v534, 7
      %v536 = vsub.s32 0, %v535
      %v537 = vrot.slane %v532, %v536
      %v538 = vlaneseq
      %v539 = vshrl.u32 %v538, 7
      %v540 = vsub.s32 1, %v539
      %v541 = vrot.slane %v532, %v540
      %v544 = vmul.f32 %v529, %v537
      %v545 = vmul.f32 %v527, %v541
      %v546 = vmul.f32 %v530, %v537
      %v547 = vmul.f32 %v528, %v541
      %548 = vrot.lane.b32.xlu0 %v417, 127
      %v549 = vpop.permute.xlu0 %548
      %550 = vrot.lane.b32.xlu0 %v421, 127
      %v551 = vpop.permute.xlu0 %550
      %552 = vrot.lane.b32.xlu0 %v419, 127
      %v553 = vpop.permute.xlu0 %552
      %554 = vrot.lane.b32.xlu0 %v423, 127
      %v555 = vpop.permute.xlu0 %554
      %vm556 = vcmp.lt.s32.totalorder %v436, 127
      %v557 = vsel %vm556, %v549, %v553
      %v558 = vsel %vm556, %v551, %v555
      %v559 = vsel %vm556, %v553, %v549
      %v560 = vsel %vm556, %v555, %v551
      %s561 = scalar_lea.vmem %s3, 10
      %v562 = vld [vmem:[%s561] sm:$0x3]
      %v564 = vlaneseq
      %v565 = vshrl.u32 %v564, 7
      %v566 = vsub.s32 0, %v565
      %v567 = vrot.slane %v562, %v566
      %v568 = vlaneseq
      %v569 = vshrl.u32 %v568, 7
      %v570 = vsub.s32 1, %v569
      %v571 = vrot.slane %v562, %v570
      %v574 = vmul.f32 %v557, %v567
      %v575 = vmul.f32 %v559, %v571
      %v576 = vmul.f32 %v558, %v567
      %v577 = vmul.f32 %v560, %v571
      %578 = vrot.lane.b32.xlu0 %v417, 113
      %v579 = vpop.permute.xlu0 %578
      %580 = vrot.lane.b32.xlu0 %v421, 113
      %v581 = vpop.permute.xlu0 %580
      %582 = vrot.lane.b32.xlu0 %v419, 113
      %v583 = vpop.permute.xlu0 %582
      %584 = vrot.lane.b32.xlu0 %v423, 113
      %v585 = vpop.permute.xlu0 %584
      %vm586 = vcmp.lt.s32.totalorder %v436, 113
      %v587 = vsel %vm586, %v579, %v583
      %v588 = vsel %vm586, %v581, %v585
      %v589 = vsel %vm586, %v583, %v579
      %v590 = vsel %vm586, %v585, %v581
      %s591 = scalar_lea.vmem %s3, 12
      %v592 = vld [vmem:[%s591] sm:$0x3]
      %v594 = vlaneseq
      %v595 = vshrl.u32 %v594, 7
      %v596 = vsub.s32 0, %v595
      %v597 = vrot.slane %v592, %v596
      %v598 = vlaneseq
      %v599 = vshrl.u32 %v598, 7
      %v600 = vsub.s32 1, %v599
      %v601 = vrot.slane %v592, %v600
      %v604 = vmul.f32 %v587, %v597
      %v605 = vmul.f32 %v589, %v601
      %v606 = vmul.f32 %v588, %v597
      %v607 = vmul.f32 %v590, %v601
      %608 = vrot.lane.b32.xlu0 %v417, 112
      %v609 = vpop.permute.xlu0 %608
      %610 = vrot.lane.b32.xlu0 %v421, 112
      %v611 = vpop.permute.xlu0 %610
      %612 = vrot.lane.b32.xlu0 %v419, 112
      %v613 = vpop.permute.xlu0 %612
      %614 = vrot.lane.b32.xlu0 %v423, 112
      %v615 = vpop.permute.xlu0 %614
      %vm616 = vcmp.lt.s32.totalorder %v436, 112
      %v617 = vsel %vm616, %v609, %v613
      %v618 = vsel %vm616, %v611, %v615
      %v619 = vsel %vm616, %v613, %v609
      %v620 = vsel %vm616, %v615, %v611
      %s621 = scalar_lea.vmem %s3, 14
      %v622 = vld [vmem:[%s621] sm:$0x3]
      %v624 = vlaneseq
      %v625 = vshrl.u32 %v624, 7
      %v626 = vsub.s32 0, %v625
      %v627 = vrot.slane %v622, %v626
      %v628 = vlaneseq
      %v629 = vshrl.u32 %v628, 7
      %v630 = vsub.s32 1, %v629
      %v631 = vrot.slane %v622, %v630
      %v634 = vmul.f32 %v617, %v627
      %v635 = vmul.f32 %v619, %v631
      %v636 = vmul.f32 %v618, %v627
      %v637 = vmul.f32 %v620, %v631
      %638 = vrot.lane.b32.xlu0 %v417, 111
      %v639 = vpop.permute.xlu0 %638
      %640 = vrot.lane.b32.xlu0 %v421, 111
      %v641 = vpop.permute.xlu0 %640
      %642 = vrot.lane.b32.xlu0 %v419, 111
      %v643 = vpop.permute.xlu0 %642
      %644 = vrot.lane.b32.xlu0 %v423, 111
      %v645 = vpop.permute.xlu0 %644
      %vm646 = vcmp.lt.s32.totalorder %v436, 111
      %v647 = vsel %vm646, %v639, %v643
      %v648 = vsel %vm646, %v641, %v645
      %v649 = vsel %vm646, %v643, %v639
      %v650 = vsel %vm646, %v645, %v641
      %s651 = scalar_lea.vmem %s3, 16
      %v652 = vld [vmem:[%s651] sm:$0x3]
      %v654 = vlaneseq
      %v655 = vshrl.u32 %v654, 7
      %v656 = vsub.s32 0, %v655
      %v657 = vrot.slane %v652, %v656
      %v658 = vlaneseq
      %v659 = vshrl.u32 %v658, 7
      %v660 = vsub.s32 1, %v659
      %v661 = vrot.slane %v652, %v660
      %v664 = vmul.f32 %v647, %v657
      %v665 = vmul.f32 %v649, %v661
      %v666 = vmul.f32 %v648, %v657
      %v667 = vmul.f32 %v650, %v661
      %v668 = vpack.c.bf16 %v456, %v454
      %v669 = vpack.c.bf16 %v457, %v455
      %v670 = vpack.c.bf16 %v486, %v484
      %v671 = vpack.c.bf16 %v487, %v485
      %v672 = vpack.c.bf16 %v516, %v514
      %v673 = vpack.c.bf16 %v517, %v515
      %v674 = vpack.c.bf16 %v546, %v544
      %v675 = vpack.c.bf16 %v547, %v545
      %v676 = vpack.c.bf16 %v421, %v417
      %v677 = vpack.c.bf16 %v423, %v419
      %v678 = vpack.c.bf16 %v576, %v574
      %v679 = vpack.c.bf16 %v577, %v575
      %v680 = vpack.c.bf16 %v606, %v604
      %v681 = vpack.c.bf16 %v607, %v605
      %v682 = vpack.c.bf16 %v636, %v634
      %v683 = vpack.c.bf16 %v637, %v635
      %v684 = vpack.c.bf16 %v666, %v664
      %v685 = vpack.c.bf16 %v667, %v665
      %687 = vset.pattern.permute.xlu0 0
      %688 = vperm.xlu0 %687, %v426
      %v689 = vpop.permute.xlu0 %688
      %v692 = vunpack.c.l.b16 %v425
      %v693 = vunpack.c.h.b16 %v425
      %v694 = vpack.c.b16 %v692, %v692
      %v695 = vpack.c.b16 %v693, %v693
      %vm697 = vcmask 130048
      %v699 = vsel %vm697, %v695, 0
      %701 = vmatprep.subr.bf16.mxu0 %v683
      %702 = vmatpush1.bf16.msra.mxu0 %v682
      %703 = vmatprep.subr.bf16.mxu0 %v681
      %704 = vmatpush1.bf16.msra.mxu0 %v680
      %705 = vmatprep.subr.bf16.mxu0 %v679
      %706 = vmatpush1.bf16.msra.mxu0 %v678
      %707 = vmatprep.subr.bf16.mxu0 %v677
      %708 = vmatpush1.bf16.msra.mxu0 %v676
      %709 = vmatprep.subr.bf16.mxu0 %v675
      %710 = vmatpush1.bf16.msra.mxu0 %v674
      %711 = vmatprep.subr.bf16.mxu0 %v673
      %712 = vmatpush1.bf16.msra.mxu0 %v672
      %713 = vmatprep.subr.bf16.mxu0 %v671
      %714 = vmatpush1.bf16.msra.mxu0 %v670
      %715 = vmatprep.subr.bf16.mxu0 %v669
      %716 = vmatpush1.bf16.msra.mxu0 %v668
      %717 = vmatprep.subr.bf16.mxu0 0
      %718 = vmatpush2.bf16.msra.mxu0 0
      %719 = vmatprep.subr.bf16.mxu0 0
      %720 = vmatpush2.bf16.msra.mxu0 0
      %721 = vmatprep.subr.bf16.mxu0 0
      %722 = vmatpush2.bf16.msra.mxu0 0
      %723 = vmatprep.subr.bf16.mxu0 0
      %724 = vmatpush2.bf16.msra.mxu0 0
      %725 = vmatprep.subr.bf16.mxu0 0
      %726 = vmatpush2.bf16.msra.mxu0 0
      %727 = vmatprep.subr.bf16.mxu0 0
      %728 = vmatpush2.bf16.msra.mxu0 0
      %729 = vmatprep.subr.bf16.mxu0 0
      %730 = vmatpush2.bf16.msra.mxu0 0
      %731 = vmatprep.subr.bf16.mxu0 %v685
      %732 = vmatpush2.bf16.msra.mxu0 %v684
      %733 = vmatprep.mubr.bf16.mxu0 %v699
      %734 = vmatmul.mubr.bf16.gmra.mxu0 %v694
      %v735 = vpop.f32.mrf.mxu0
      %v736 = vadd.f32 %v689, %v735
      %v737 = vpop.f32.mrf.mxu0
      %v738 = vadd.f32 %v689, %v737
      %v739 = vpop.f32.mrf.mxu0
      %v740 = vpop.f32.mrf.mxu0
      %741 = vdwg.mxu0
      %v742 = vld [vmem:[%s5] sm:$0xf]
      %s743 = scalar_lea.vmem %s6, 8
      %v744 = vld [vmem:[%s743] sm:$0xff]
      %745 = vrot.lane.b32.xlu0 %v736, 17
      %v746 = vpop.permute.xlu0 %745
      %747 = vrot.lane.b32.xlu0 %v738, 17
      %v748 = vpop.permute.xlu0 %747
      %v749 = vsel %vm437, %v746, %v748
      %v750 = vsel %vm437, %v748, %v746
      %v751 = vmul.f32 %v750, %v447
      %v752 = vmul.f32 %v749, %v451
      %753 = vrot.lane.b32.xlu0 %v736, 16
      %v754 = vpop.permute.xlu0 %753
      %755 = vrot.lane.b32.xlu0 %v738, 16
      %v756 = vpop.permute.xlu0 %755
      %v757 = vsel %vm466, %v754, %v756
      %v758 = vsel %vm466, %v756, %v754
      %v759 = vmul.f32 %v758, %v477
      %v760 = vmul.f32 %v757, %v481
      %761 = vrot.lane.b32.xlu0 %v736, 15
      %v762 = vpop.permute.xlu0 %761
      %763 = vrot.lane.b32.xlu0 %v738, 15
      %v764 = vpop.permute.xlu0 %763
      %v765 = vsel %vm496, %v762, %v764
      %v766 = vsel %vm496, %v764, %v762
      %v767 = vmul.f32 %v766, %v507
      %v768 = vmul.f32 %v765, %v511
      %769 = vrot.lane.b32.xlu0 %v736, 1
      %v770 = vpop.permute.xlu0 %769
      %771 = vrot.lane.b32.xlu0 %v738, 1
      %v772 = vpop.permute.xlu0 %771
      %v773 = vsel %vm526, %v770, %v772
      %v774 = vsel %vm526, %v772, %v770
      %v775 = vmul.f32 %v774, %v537
      %v776 = vmul.f32 %v773, %v541
      %777 = vrot.lane.b32.xlu0 %v736, 127
      %v778 = vpop.permute.xlu0 %777
      %779 = vrot.lane.b32.xlu0 %v738, 127
      %v780 = vpop.permute.xlu0 %779
      %v781 = vsel %vm556, %v778, %v780
      %v782 = vsel %vm556, %v780, %v778
      %v783 = vmul.f32 %v781, %v567
      %v784 = vmul.f32 %v782, %v571
      %785 = vrot.lane.b32.xlu0 %v736, 113
      %v786 = vpop.permute.xlu0 %785
      %787 = vrot.lane.b32.xlu0 %v738, 113
      %v788 = vpop.permute.xlu0 %787
      %v789 = vsel %vm586, %v786, %v788
      %v790 = vsel %vm586, %v788, %v786
      %v791 = vmul.f32 %v789, %v597
      %v792 = vmul.f32 %v790, %v601
      %793 = vrot.lane.b32.xlu0 %v736, 112
      %v794 = vpop.permute.xlu0 %793
      %795 = vrot.lane.b32.xlu0 %v738, 112
      %v796 = vpop.permute.xlu0 %795
      %v797 = vsel %vm616, %v794, %v796
      %v798 = vsel %vm616, %v796, %v794
      %v799 = vmul.f32 %v797, %v627
      %v800 = vmul.f32 %v798, %v631
      %801 = vrot.lane.b32.xlu0 %v736, 111
      %v802 = vpop.permute.xlu0 %801
      %803 = vrot.lane.b32.xlu0 %v738, 111
      %v804 = vpop.permute.xlu0 %803
      %v805 = vsel %vm646, %v802, %v804
      %v806 = vsel %vm646, %v804, %v802
      %v807 = vmul.f32 %v805, %v657
      %v808 = vmul.f32 %v806, %v661
      %v809 = vpack.c.bf16 %v759, %v751
      %v810 = vpack.c.bf16 %v760, %v752
      %v811 = vpack.c.bf16 %v775, %v767
      %v812 = vpack.c.bf16 %v776, %v768
      %v813 = vpack.c.bf16 %v783, %v736
      %v814 = vpack.c.bf16 %v784, %v738
      %v815 = vpack.c.bf16 %v799, %v791
      %v816 = vpack.c.bf16 %v800, %v792
      %v817 = vpack.c.bf16 %v807, %v807
      %v818 = vpack.c.bf16 %v808, %v808
      %820 = vset.pattern.permute.xlu0 0
      %821 = vperm.xlu0 %820, %v744
      %v822 = vpop.permute.xlu0 %821
      %vm824 = vcmask 588800
      %v826 = vsel %vm824, %v742, 0
      %vm828 = vcmask 1043456
      %v830 = vsel %vm828, %v817, 0
      %v833 = vsel %vm828, %v818, 0
      %835 = vmatprep.subr.bf16.mxu0 0
      %836 = vmatpush1.bf16.msra.mxu0 0
      %837 = vmatprep.subr.bf16.mxu0 0
      %838 = vmatpush1.bf16.msra.mxu0 0
      %839 = vmatprep.subr.bf16.mxu0 0
      %840 = vmatpush1.bf16.msra.mxu0 0
      %841 = vmatprep.subr.bf16.mxu0 %v833
      %842 = vmatpush1.bf16.msra.mxu0 %v830
      %843 = vmatprep.subr.bf16.mxu0 %v816
      %844 = vmatpush1.bf16.msra.mxu0 %v815
      %845 = vmatprep.subr.bf16.mxu0 %v814
      %846 = vmatpush1.bf16.msra.mxu0 %v813
      %847 = vmatprep.subr.bf16.mxu0 %v812
      %848 = vmatpush1.bf16.msra.mxu0 %v811
      %849 = vmatprep.subr.bf16.mxu0 %v810
      %850 = vmatpush1.bf16.msra.mxu0 %v809
      %851 = vmatprep.subr.bf16.mxu0 0
      %852 = vmatpush2.bf16.msra.mxu0 0
      %853 = vmatprep.subr.bf16.mxu0 0
      %854 = vmatpush2.bf16.msra.mxu0 0
      %855 = vmatprep.subr.bf16.mxu0 0
      %856 = vmatpush2.bf16.msra.mxu0 0
      %857 = vmatprep.subr.bf16.mxu0 0
      %858 = vmatpush2.bf16.msra.mxu0 0
      %859 = vmatprep.subr.bf16.mxu0 0
      %860 = vmatpush2.bf16.msra.mxu0 0
      %861 = vmatprep.subr.bf16.mxu0 0
      %862 = vmatpush2.bf16.msra.mxu0 0
      %863 = vmatprep.subr.bf16.mxu0 0
      %864 = vmatpush2.bf16.msra.mxu0 0
      %865 = vmatprep.subr.bf16.mxu0 0
      %866 = vmatpush2.bf16.msra.mxu0 0
      %867 = vmatprep.mubr.bf16.mxu0 0
      %868 = vmatmul.mubr.bf16.gmra.mxu0 %v826
      %v869 = vpop.f32.mrf.mxu0
      %v870 = vadd.f32 %v822, %v869
      %v871 = vpop.f32.mrf.mxu0
      %v872 = vadd.f32 %v822, %v871
      %v873 = vpop.f32.mrf.mxu0
      %v874 = vpop.f32.mrf.mxu0
      %875 = vdwg.mxu0
      %s876 = scalar_lea.vmem %s6, 16
      %v877 = vld [vmem:[%s876] sm:$0xff]
      %s878 = scalar_lea.vmem %s6, 24
      %v879 = vld [vmem:[%s878] sm:$0xff]
      %v880 = vadd.f32 %v870, %v872
      %881 = vadd.xlane.f32.xlu0 %v880
      %v882 = vpop.xlane.xlu0 %881
      %v883 = vmul.f32 %v870, %v870
      %v884 = vmul.f32 %v872, %v872
      %v885 = vadd.f32 %v883, %v884
      %886 = vadd.xlane.f32.xlu0 %v885
      %v887 = vpop.xlane.xlu0 %886
      %vm888 = vcmask 7168
      %v889 = vsel %vm888, %v882, %v887
      %v890 = vld [vmem:[%s7] sm:$0xff]
      %vm891 = vcmask 64512
      %v893 = vsel %vm891, %v890, 0
      %895 = vmatprep.subr.mxu0 0.0
      %896 = vmatpush1.msra.mxu0 0.0
      %897 = vmatprep.subr.mxu0 0.0
      %898 = vmatpush1.msra.mxu0 0.0
      %899 = vmatprep.subr.mxu0 0.0
      %900 = vmatpush1.msra.mxu0 0.0
      %901 = vmatprep.subr.mxu0 0.0
      %902 = vmatpush1.msra.mxu0 0.0
      %903 = vmatprep.subr.mxu0 0.0
      %904 = vmatpush1.msra.mxu0 0.0
      %905 = vmatprep.subr.mxu0 0.0
      %906 = vmatpush1.msra.mxu0 0.0
      %907 = vmatprep.subr.mxu0 0.0
      %908 = vmatpush1.msra.mxu0 0.0
      %909 = vmatprep.subr.mxu0 0.0
      %910 = vmatpush1.msra.mxu0 0.0
      %911 = vmatprep.subr.mxu0 0.0
      %912 = vmatpush1.msra.mxu0 0.0
      %913 = vmatprep.subr.mxu0 0.0
      %914 = vmatpush1.msra.mxu0 0.0
      %915 = vmatprep.subr.mxu0 0.0
      %916 = vmatpush1.msra.mxu0 0.0
      %917 = vmatprep.subr.mxu0 0.0
      %918 = vmatpush1.msra.mxu0 0.0
      %919 = vmatprep.subr.mxu0 0.0
      %920 = vmatpush1.msra.mxu0 0.0
      %921 = vmatprep.subr.mxu0 0.0
      %922 = vmatpush1.msra.mxu0 0.0
      %923 = vmatprep.subr.mxu0 0.0
      %924 = vmatpush1.msra.mxu0 0.0
      %925 = vmatprep.subr.mxu0 0.0
      %926 = vmatpush1.msra.mxu0 %v889
      %927 = vmatprep.subr.mxu0 0.0
      %928 = vmatpush2.msra.mxu0 0.0
      %929 = vmatprep.subr.mxu0 0.0
      %930 = vmatpush2.msra.mxu0 0.0
      %931 = vmatprep.subr.mxu0 0.0
      %932 = vmatpush2.msra.mxu0 0.0
      %933 = vmatprep.subr.mxu0 0.0
      %934 = vmatpush2.msra.mxu0 0.0
      %935 = vmatprep.subr.mxu0 0.0
      %936 = vmatpush2.msra.mxu0 0.0
      %937 = vmatprep.subr.mxu0 0.0
      %938 = vmatpush2.msra.mxu0 0.0
      %939 = vmatprep.subr.mxu0 0.0
      %940 = vmatpush2.msra.mxu0 0.0
      %941 = vmatprep.subr.mxu0 0.0
      %942 = vmatpush2.msra.mxu0 0.0
      %943 = vmatprep.subr.mxu0 0.0
      %944 = vmatpush2.msra.mxu0 0.0
      %945 = vmatprep.subr.mxu0 0.0
      %946 = vmatpush2.msra.mxu0 0.0
      %947 = vmatprep.subr.mxu0 0.0
      %948 = vmatpush2.msra.mxu0 0.0
      %949 = vmatprep.subr.mxu0 0.0
      %950 = vmatpush2.msra.mxu0 0.0
      %951 = vmatprep.subr.mxu0 0.0
      %952 = vmatpush2.msra.mxu0 0.0
      %953 = vmatprep.subr.mxu0 0.0
      %954 = vmatpush2.msra.mxu0 0.0
      %955 = vmatprep.subr.mxu0 0.0
      %956 = vmatpush2.msra.mxu0 0.0
      %957 = vmatprep.subr.mxu0 0.0
      %958 = vmatpush2.msra.mxu0 0.0
      %959 = vmatprep.mubr.f32.mxu0 0.0
      %960 = vmatmul.mubr.f32.gmra.mxu0 %v893
      %v961 = vpop.f32.mrf.mxu0
      %v962 = vadd.f32 0.0, %v961
      %v963 = vpop.f32.mrf.mxu0
      %964 = vdwg.mxu0
      %v965 = vmul.f32 %v962, %v962
      %967 = vrot.lane.b32.xlu0 %v965, 1
      %v968 = vpop.permute.xlu0 %967
      %v970 = vsub.f32 %v962, %v968
      %v971 = vmax.f32 %v970, 0.0
      %973 = vset.pattern.permute.xlu0 0
      %974 = vperm.xlu0 %973, %v962
      %v975 = vpop.permute.xlu0 %974
      %v977 = vsub.f32 %v870, %v975
      %v978 = vsub.f32 %v872, %v975
      %v979 = vadd.f32 %v971, 1e-05
      %v980 = vrsqrt.pop %v979
      %982 = vset.pattern.permute.xlu0 1
      %983 = vperm.xlu0 %982, %v980
      %v984 = vpop.permute.xlu0 %983
      %v986 = vmul.f32 %v977, %v984
      %v987 = vmul.f32 %v978, %v984
      %989 = vset.pattern.permute.xlu0 0
      %990 = vperm.xlu0 %989, %v877
      %v991 = vpop.permute.xlu0 %990
      %v993 = vmul.f32 %v986, %v991
      %v994 = vmul.f32 %v987, %v991
      %996 = vset.pattern.permute.xlu0 0
      %997 = vperm.xlu0 %996, %v879
      %v998 = vpop.permute.xlu0 %997
      %v1000 = vadd.f32 %v993, %v998
      %v1001 = vadd.f32 %v994, %v998
      %v1002 = vsub.f32 0.0, %v1000
      %v1003 = vsub.f32 0.0, %v1001
      %v1004 = vmul.f32 %v1002, 1.442695
      %v1005 = vpow.pop %v1004
      %v1006 = vmul.f32 %v1003, 1.442695
      %v1007 = vpow.pop %v1006
      %v1008 = vadd.f32 %v1005, 1.0
      %v1009 = vadd.f32 %v1007, 1.0
      %v1010 = vrcp.pop %v1008
      %v1011 = vrcp.pop %v1009
      %v1012 = vmul.f32 %v1000, %v1010
      %v1013 = vmul.f32 %v1001, %v1011
      %v1014 = vld [vmem:[%s320] sm:$0xff]
      %1016 = vset.pattern.permute.xlu0 0
      %1017 = vperm.xlu0 %1016, %v1014
      %v1018 = vpop.permute.xlu0 %1017
      %v1020 = vadd.f32 %v1012, %v1018
      %v1021 = vadd.f32 %v1013, %v1018
      %s1022 = scalar_lea.vmem %s5, 4
      %v1023 = vld [vmem:[%s1022] sm:$0xf]
      %s1024 = scalar_lea.vmem %s6, 32
      %v1025 = vld [vmem:[%s1024] sm:$0xff]
      %1026 = vrot.lane.b32.xlu0 %v1020, 17
      %v1027 = vpop.permute.xlu0 %1026
      %1028 = vrot.lane.b32.xlu0 %v1021, 17
      %v1029 = vpop.permute.xlu0 %1028
      %v1030 = vsel %vm437, %v1027, %v1029
      %v1031 = vsel %vm437, %v1029, %v1027
      %v1032 = vmul.f32 %v1031, %v447
      %v1033 = vmul.f32 %v1030, %v451
      %1034 = vrot.lane.b32.xlu0 %v1020, 16
      %v1035 = vpop.permute.xlu0 %1034
      %1036 = vrot.lane.b32.xlu0 %v1021, 16
      %v1037 = vpop.permute.xlu0 %1036
      %v1038 = vsel %vm466, %v1035, %v1037
      %v1039 = vsel %vm466, %v1037, %v1035
      %v1040 = vmul.f32 %v1039, %v477
      %v1041 = vmul.f32 %v1038, %v481
      %1042 = vrot.lane.b32.xlu0 %v1020, 15
      %v1043 = vpop.permute.xlu0 %1042
      %1044 = vrot.lane.b32.xlu0 %v1021, 15
      %v1045 = vpop.permute.xlu0 %1044
      %v1046 = vsel %vm496, %v1043, %v1045
      %v1047 = vsel %vm496, %v1045, %v1043
      %v1048 = vmul.f32 %v1047, %v507
      %v1049 = vmul.f32 %v1046, %v511
      %1050 = vrot.lane.b32.xlu0 %v1020, 1
      %v1051 = vpop.permute.xlu0 %1050
      %1052 = vrot.lane.b32.xlu0 %v1021, 1
      %v1053 = vpop.permute.xlu0 %1052
      %v1054 = vsel %vm526, %v1051, %v1053
      %v1055 = vsel %vm526, %v1053, %v1051
      %v1056 = vmul.f32 %v1055, %v537
      %v1057 = vmul.f32 %v1054, %v541
      %1058 = vrot.lane.b32.xlu0 %v1020, 127
      %v1059 = vpop.permute.xlu0 %1058
      %1060 = vrot.lane.b32.xlu0 %v1021, 127
      %v1061 = vpop.permute.xlu0 %1060
      %v1062 = vsel %vm556, %v1059, %v1061
      %v1063 = vsel %vm556, %v1061, %v1059
      %v1064 = vmul.f32 %v1062, %v567
      %v1065 = vmul.f32 %v1063, %v571
      %1066 = vrot.lane.b32.xlu0 %v1020, 113
      %v1067 = vpop.permute.xlu0 %1066
      %1068 = vrot.lane.b32.xlu0 %v1021, 113
      %v1069 = vpop.permute.xlu0 %1068
      %v1070 = vsel %vm586, %v1067, %v1069
      %v1071 = vsel %vm586, %v1069, %v1067
      %v1072 = vmul.f32 %v1070, %v597
      %v1073 = vmul.f32 %v1071, %v601
      %1074 = vrot.lane.b32.xlu0 %v1020, 112
      %v1075 = vpop.permute.xlu0 %1074
      %1076 = vrot.lane.b32.xlu0 %v1021, 112
      %v1077 = vpop.permute.xlu0 %1076
      %v1078 = vsel %vm616, %v1075, %v1077
      %v1079 = vsel %vm616, %v1077, %v1075
      %v1080 = vmul.f32 %v1078, %v627
      %v1081 = vmul.f32 %v1079, %v631
      %1082 = vrot.lane.b32.xlu0 %v1020, 111
      %v1083 = vpop.permute.xlu0 %1082
      %1084 = vrot.lane.b32.xlu0 %v1021, 111
      %v1085 = vpop.permute.xlu0 %1084
      %v1086 = vsel %vm646, %v1083, %v1085
      %v1087 = vsel %vm646, %v1085, %v1083
      %v1088 = vmul.f32 %v1086, %v657
      %v1089 = vmul.f32 %v1087, %v661
      %v1090 = vpack.c.bf16 %v1040, %v1032
      %v1091 = vpack.c.bf16 %v1041, %v1033
      %v1092 = vpack.c.bf16 %v1056, %v1048
      %v1093 = vpack.c.bf16 %v1057, %v1049
      %v1094 = vpack.c.bf16 %v1064, %v1020
      %v1095 = vpack.c.bf16 %v1065, %v1021
      %v1096 = vpack.c.bf16 %v1080, %v1072
      %v1097 = vpack.c.bf16 %v1081, %v1073
      %v1098 = vpack.c.bf16 %v1088, %v1088
      %v1099 = vpack.c.bf16 %v1089, %v1089
      %1101 = vset.pattern.permute.xlu0 0
      %1102 = vperm.xlu0 %1101, %v1025
      %v1103 = vpop.permute.xlu0 %1102
      %v1106 = vsel %vm824, %v1023, 0
      %v1109 = vsel %vm828, %v1098, 0
      %v1112 = vsel %vm828, %v1099, 0
      %1114 = vmatprep.subr.bf16.mxu0 0
      %1115 = vmatpush1.bf16.msra.mxu0 0
      %1116 = vmatprep.subr.bf16.mxu0 0
      %1117 = vmatpush1.bf16.msra.mxu0 0
      %1118 = vmatprep.subr.bf16.mxu0 0
      %1119 = vmatpush1.bf16.msra.mxu0 0
      %1120 = vmatprep.subr.bf16.mxu0 %v1112
      %1121 = vmatpush1.bf16.msra.mxu0 %v1109
      %1122 = vmatprep.subr.bf16.mxu0 %v1097
      %1123 = vmatpush1.bf16.msra.mxu0 %v1096
      %1124 = vmatprep.subr.bf16.mxu0 %v1095
      %1125 = vmatpush1.bf16.msra.mxu0 %v1094
      %1126 = vmatprep.subr.bf16.mxu0 %v1093
      %1127 = vmatpush1.bf16.msra.mxu0 %v1092
      %1128 = vmatprep.subr.bf16.mxu0 %v1091
      %1129 = vmatpush1.bf16.msra.mxu0 %v1090
      %1130 = vmatprep.subr.bf16.mxu0 0
      %1131 = vmatpush2.bf16.msra.mxu0 0
      %1132 = vmatprep.subr.bf16.mxu0 0
      %1133 = vmatpush2.bf16.msra.mxu0 0
      %1134 = vmatprep.subr.bf16.mxu0 0
      %1135 = vmatpush2.bf16.msra.mxu0 0
      %1136 = vmatprep.subr.bf16.mxu0 0
      %1137 = vmatpush2.bf16.msra.mxu0 0
      %1138 = vmatprep.subr.bf16.mxu0 0
      %1139 = vmatpush2.bf16.msra.mxu0 0
      %1140 = vmatprep.subr.bf16.mxu0 0
      %1141 = vmatpush2.bf16.msra.mxu0 0
      %1142 = vmatprep.subr.bf16.mxu0 0
      %1143 = vmatpush2.bf16.msra.mxu0 0
      %1144 = vmatprep.subr.bf16.mxu0 0
      %1145 = vmatpush2.bf16.msra.mxu0 0
      %1146 = vmatprep.mubr.bf16.mxu0 0
      %1147 = vmatmul.mubr.bf16.gmra.mxu0 %v1106
      %v1148 = vpop.f32.mrf.mxu0
      %v1149 = vadd.f32 %v1103, %v1148
      %v1150 = vpop.f32.mrf.mxu0
      %v1151 = vadd.f32 %v1103, %v1150
      %v1152 = vpop.f32.mrf.mxu0
      %v1153 = vpop.f32.mrf.mxu0
      %1154 = vdwg.mxu0
      %s1155 = scalar_lea.vmem %s6, 40
      %v1156 = vld [vmem:[%s1155] sm:$0xff]
      %s1157 = scalar_lea.vmem %s6, 48
      %v1158 = vld [vmem:[%s1157] sm:$0xff]
      %v1159 = vadd.f32 %v1149, %v1151
      %1160 = vadd.xlane.f32.xlu0 %v1159
      %v1161 = vpop.xlane.xlu0 %1160
      %v1162 = vmul.f32 %v1149, %v1149
      %v1163 = vmul.f32 %v1151, %v1151
      %v1164 = vadd.f32 %v1162, %v1163
      %1165 = vadd.xlane.f32.xlu0 %v1164
      %v1166 = vpop.xlane.xlu0 %1165
      %v1167 = vsel %vm888, %v1161, %v1166
      %1168 = vmatprep.subr.mxu0 0.0
      %1169 = vmatpush1.msra.mxu0 0.0
      %1170 = vmatprep.subr.mxu0 0.0
      %1171 = vmatpush1.msra.mxu0 0.0
      %1172 = vmatprep.subr.mxu0 0.0
      %1173 = vmatpush1.msra.mxu0 0.0
      %1174 = vmatprep.subr.mxu0 0.0
      %1175 = vmatpush1.msra.mxu0 0.0
      %1176 = vmatprep.subr.mxu0 0.0
      %1177 = vmatpush1.msra.mxu0 0.0
      %1178 = vmatprep.subr.mxu0 0.0
      %1179 = vmatpush1.msra.mxu0 0.0
      %1180 = vmatprep.subr.mxu0 0.0
      %1181 = vmatpush1.msra.mxu0 0.0
      %1182 = vmatprep.subr.mxu0 0.0
      %1183 = vmatpush1.msra.mxu0 0.0
      %1184 = vmatprep.subr.mxu0 0.0
      %1185 = vmatpush1.msra.mxu0 0.0
      %1186 = vmatprep.subr.mxu0 0.0
      %1187 = vmatpush1.msra.mxu0 0.0
      %1188 = vmatprep.subr.mxu0 0.0
      %1189 = vmatpush1.msra.mxu0 0.0
      %1190 = vmatprep.subr.mxu0 0.0
      %1191 = vmatpush1.msra.mxu0 0.0
      %1192 = vmatprep.subr.mxu0 0.0
      %1193 = vmatpush1.msra.mxu0 0.0
      %1194 = vmatprep.subr.mxu0 0.0
      %1195 = vmatpush1.msra.mxu0 0.0
      %1196 = vmatprep.subr.mxu0 0.0
      %1197 = vmatpush1.msra.mxu0 0.0
      %1198 = vmatprep.subr.mxu0 0.0
      %1199 = vmatpush1.msra.mxu0 %v1167
      %1200 = vmatprep.subr.mxu0 0.0
      %1201 = vmatpush2.msra.mxu0 0.0
      %1202 = vmatprep.subr.mxu0 0.0
      %1203 = vmatpush2.msra.mxu0 0.0
      %1204 = vmatprep.subr.mxu0 0.0
      %1205 = vmatpush2.msra.mxu0 0.0
      %1206 = vmatprep.subr.mxu0 0.0
      %1207 = vmatpush2.msra.mxu0 0.0
      %1208 = vmatprep.subr.mxu0 0.0
      %1209 = vmatpush2.msra.mxu0 0.0
      %1210 = vmatprep.subr.mxu0 0.0
      %1211 = vmatpush2.msra.mxu0 0.0
      %1212 = vmatprep.subr.mxu0 0.0
      %1213 = vmatpush2.msra.mxu0 0.0
      %1214 = vmatprep.subr.mxu0 0.0
      %1215 = vmatpush2.msra.mxu0 0.0
      %1216 = vmatprep.subr.mxu0 0.0
      %1217 = vmatpush2.msra.mxu0 0.0
      %1218 = vmatprep.subr.mxu0 0.0
      %1219 = vmatpush2.msra.mxu0 0.0
      %1220 = vmatprep.subr.mxu0 0.0
      %1221 = vmatpush2.msra.mxu0 0.0
      %1222 = vmatprep.subr.mxu0 0.0
      %1223 = vmatpush2.msra.mxu0 0.0
      %1224 = vmatprep.subr.mxu0 0.0
      %1225 = vmatpush2.msra.mxu0 0.0
      %1226 = vmatprep.subr.mxu0 0.0
      %1227 = vmatpush2.msra.mxu0 0.0
      %1228 = vmatprep.subr.mxu0 0.0
      %1229 = vmatpush2.msra.mxu0 0.0
      %1230 = vmatprep.subr.mxu0 0.0
      %1231 = vmatpush2.msra.mxu0 0.0
      %1232 = vmatprep.mubr.f32.mxu0 0.0
      %1233 = vmatmul.mubr.f32.gmra.mxu0 %v893
      %v1234 = vpop.f32.mrf.mxu0
      %v1235 = vadd.f32 0.0, %v1234
      %v1236 = vpop.f32.mrf.mxu0
      %1237 = vdwg.mxu0
      %v1238 = vmul.f32 %v1235, %v1235
      %1240 = vrot.lane.b32.xlu0 %v1238, 1
      %v1241 = vpop.permute.xlu0 %1240
      %v1243 = vsub.f32 %v1235, %v1241
      %v1244 = vmax.f32 %v1243, 0.0
      %1246 = vset.pattern.permute.xlu0 0
      %1247 = vperm.xlu0 %1246, %v1235
      %v1248 = vpop.permute.xlu0 %1247
      %v1250 = vsub.f32 %v1149, %v1248
      %v1251 = vsub.f32 %v1151, %v1248
      %v1252 = vadd.f32 %v1244, 1e-05
      %v1253 = vrsqrt.pop %v1252
      %1255 = vset.pattern.permute.xlu0 1
      %1256 = vperm.xlu0 %1255, %v1253
      %v1257 = vpop.permute.xlu0 %1256
      %v1259 = vmul.f32 %v1250, %v1257
      %v1260 = vmul.f32 %v1251, %v1257
      %1262 = vset.pattern.permute.xlu0 0
      %1263 = vperm.xlu0 %1262, %v1156
      %v1264 = vpop.permute.xlu0 %1263
      %v1266 = vmul.f32 %v1259, %v1264
      %v1267 = vmul.f32 %v1260, %v1264
      %1269 = vset.pattern.permute.xlu0 0
      %1270 = vperm.xlu0 %1269, %v1158
      %v1271 = vpop.permute.xlu0 %1270
      %v1273 = vadd.f32 %v1266, %v1271
      %v1274 = vadd.f32 %v1267, %v1271
      %v1275 = vsub.f32 0.0, %v1273
      %v1276 = vsub.f32 0.0, %v1274
      %v1277 = vmul.f32 %v1275, 1.442695
      %v1278 = vpow.pop %v1277
      %v1279 = vmul.f32 %v1276, 1.442695
      %v1280 = vpow.pop %v1279
      %v1281 = vadd.f32 %v1278, 1.0
      %v1282 = vadd.f32 %v1280, 1.0
      %v1283 = vrcp.pop %v1281
      %v1284 = vrcp.pop %v1282
      %v1285 = vmul.f32 %v1273, %v1283
      %v1286 = vmul.f32 %v1274, %v1284
      %v1287 = vadd.f32 %v1285, %v736
      %v1288 = vadd.f32 %v1286, %v738
      %s1289 = scalar_lea.vmem %s5, 8
      %v1290 = vld [vmem:[%s1289] sm:$0xf]
      %s1291 = scalar_lea.vmem %s6, 56
      %v1292 = vld [vmem:[%s1291] sm:$0xff]
      %1293 = vrot.lane.b32.xlu0 %v1287, 17
      %v1294 = vpop.permute.xlu0 %1293
      %1295 = vrot.lane.b32.xlu0 %v1288, 17
      %v1296 = vpop.permute.xlu0 %1295
      %v1297 = vsel %vm437, %v1294, %v1296
      %v1298 = vsel %vm437, %v1296, %v1294
      %v1299 = vmul.f32 %v1298, %v447
      %v1300 = vmul.f32 %v1297, %v451
      %1301 = vrot.lane.b32.xlu0 %v1287, 16
      %v1302 = vpop.permute.xlu0 %1301
      %1303 = vrot.lane.b32.xlu0 %v1288, 16
      %v1304 = vpop.permute.xlu0 %1303
      %v1305 = vsel %vm466, %v1302, %v1304
      %v1306 = vsel %vm466, %v1304, %v1302
      %v1307 = vmul.f32 %v1306, %v477
      %v1308 = vmul.f32 %v1305, %v481
      %1309 = vrot.lane.b32.xlu0 %v1287, 15
      %v1310 = vpop.permute.xlu0 %1309
      %1311 = vrot.lane.b32.xlu0 %v1288, 15
      %v1312 = vpop.permute.xlu0 %1311
      %v1313 = vsel %vm496, %v1310, %v1312
      %v1314 = vsel %vm496, %v1312, %v1310
      %v1315 = vmul.f32 %v1314, %v507
      %v1316 = vmul.f32 %v1313, %v511
      %1317 = vrot.lane.b32.xlu0 %v1287, 1
      %v1318 = vpop.permute.xlu0 %1317
      %1319 = vrot.lane.b32.xlu0 %v1288, 1
      %v1320 = vpop.permute.xlu0 %1319
      %v1321 = vsel %vm526, %v1318, %v1320
      %v1322 = vsel %vm526, %v1320, %v1318
      %v1323 = vmul.f32 %v1322, %v537
      %v1324 = vmul.f32 %v1321, %v541
      %1325 = vrot.lane.b32.xlu0 %v1287, 127
      %v1326 = vpop.permute.xlu0 %1325
      %1327 = vrot.lane.b32.xlu0 %v1288, 127
      %v1328 = vpop.permute.xlu0 %1327
      %v1329 = vsel %vm556, %v1326, %v1328
      %v1330 = vsel %vm556, %v1328, %v1326
      %v1331 = vmul.f32 %v1329, %v567
      %v1332 = vmul.f32 %v1330, %v571
      %1333 = vrot.lane.b32.xlu0 %v1287, 113
      %v1334 = vpop.permute.xlu0 %1333
      %1335 = vrot.lane.b32.xlu0 %v1288, 113
      %v1336 = vpop.permute.xlu0 %1335
      %v1337 = vsel %vm586, %v1334, %v1336
      %v1338 = vsel %vm586, %v1336, %v1334
      %v1339 = vmul.f32 %v1337, %v597
      %v1340 = vmul.f32 %v1338, %v601
      %1341 = vrot.lane.b32.xlu0 %v1287, 112
      %v1342 = vpop.permute.xlu0 %1341
      %1343 = vrot.lane.b32.xlu0 %v1288, 112
      %v1344 = vpop.permute.xlu0 %1343
      %v1345 = vsel %vm616, %v1342, %v1344
      %v1346 = vsel %vm616, %v1344, %v1342
      %v1347 = vmul.f32 %v1345, %v627
      %v1348 = vmul.f32 %v1346, %v631
      %1349 = vrot.lane.b32.xlu0 %v1287, 111
      %v1350 = vpop.permute.xlu0 %1349
      %1351 = vrot.lane.b32.xlu0 %v1288, 111
      %v1352 = vpop.permute.xlu0 %1351
      %v1353 = vsel %vm646, %v1350, %v1352
      %v1354 = vsel %vm646, %v1352, %v1350
      %v1355 = vmul.f32 %v1353, %v657
      %v1356 = vmul.f32 %v1354, %v661
      %v1357 = vpack.c.bf16 %v1307, %v1299
      %v1358 = vpack.c.bf16 %v1308, %v1300
      %v1359 = vpack.c.bf16 %v1323, %v1315
      %v1360 = vpack.c.bf16 %v1324, %v1316
      %v1361 = vpack.c.bf16 %v1331, %v1287
      %v1362 = vpack.c.bf16 %v1332, %v1288
      %v1363 = vpack.c.bf16 %v1347, %v1339
      %v1364 = vpack.c.bf16 %v1348, %v1340
      %v1365 = vpack.c.bf16 %v1355, %v1355
      %v1366 = vpack.c.bf16 %v1356, %v1356
      %1368 = vset.pattern.permute.xlu0 0
      %1369 = vperm.xlu0 %1368, %v1292
      %v1370 = vpop.permute.xlu0 %1369
      %v1373 = vsel %vm824, %v1290, 0
      %v1376 = vsel %vm828, %v1365, 0
      %v1379 = vsel %vm828, %v1366, 0
      %1381 = vmatprep.subr.bf16.mxu0 0
      %1382 = vmatpush1.bf16.msra.mxu0 0
      %1383 = vmatprep.subr.bf16.mxu0 0
      %1384 = vmatpush1.bf16.msra.mxu0 0
      %1385 = vmatprep.subr.bf16.mxu0 0
      %1386 = vmatpush1.bf16.msra.mxu0 0
      %1387 = vmatprep.subr.bf16.mxu0 %v1379
      %1388 = vmatpush1.bf16.msra.mxu0 %v1376
      %1389 = vmatprep.subr.bf16.mxu0 %v1364
      %1390 = vmatpush1.bf16.msra.mxu0 %v1363
      %1391 = vmatprep.subr.bf16.mxu0 %v1362
      %1392 = vmatpush1.bf16.msra.mxu0 %v1361
      %1393 = vmatprep.subr.bf16.mxu0 %v1360
      %1394 = vmatpush1.bf16.msra.mxu0 %v1359
      %1395 = vmatprep.subr.bf16.mxu0 %v1358
      %1396 = vmatpush1.bf16.msra.mxu0 %v1357
      %1397 = vmatprep.subr.bf16.mxu0 0
      %1398 = vmatpush2.bf16.msra.mxu0 0
      %1399 = vmatprep.subr.bf16.mxu0 0
      %1400 = vmatpush2.bf16.msra.mxu0 0
      %1401 = vmatprep.subr.bf16.mxu0 0
      %1402 = vmatpush2.bf16.msra.mxu0 0
      %1403 = vmatprep.subr.bf16.mxu0 0
      %1404 = vmatpush2.bf16.msra.mxu0 0
      %1405 = vmatprep.subr.bf16.mxu0 0
      %1406 = vmatpush2.bf16.msra.mxu0 0
      %1407 = vmatprep.subr.bf16.mxu0 0
      %1408 = vmatpush2.bf16.msra.mxu0 0
      %1409 = vmatprep.subr.bf16.mxu0 0
      %1410 = vmatpush2.bf16.msra.mxu0 0
      %1411 = vmatprep.subr.bf16.mxu0 0
      %1412 = vmatpush2.bf16.msra.mxu0 0
      %1413 = vmatprep.mubr.bf16.mxu0 0
      %1414 = vmatmul.mubr.bf16.gmra.mxu0 %v1373
      %v1415 = vpop.f32.mrf.mxu0
      %v1416 = vadd.f32 %v1370, %v1415
      %v1417 = vpop.f32.mrf.mxu0
      %v1418 = vadd.f32 %v1370, %v1417
      %v1419 = vpop.f32.mrf.mxu0
      %v1420 = vpop.f32.mrf.mxu0
      %1421 = vdwg.mxu0
      %s1422 = scalar_lea.vmem %s6, 64
      %v1423 = vld [vmem:[%s1422] sm:$0xff]
      %s1424 = scalar_lea.vmem %s6, 72
      %v1425 = vld [vmem:[%s1424] sm:$0xff]
      %v1426 = vadd.f32 %v1416, %v1418
      %1427 = vadd.xlane.f32.xlu0 %v1426
      %v1428 = vpop.xlane.xlu0 %1427
      %v1429 = vmul.f32 %v1416, %v1416
      %v1430 = vmul.f32 %v1418, %v1418
      %v1431 = vadd.f32 %v1429, %v1430
      %1432 = vadd.xlane.f32.xlu0 %v1431
      %v1433 = vpop.xlane.xlu0 %1432
      %v1434 = vsel %vm888, %v1428, %v1433
      %1435 = vmatprep.subr.mxu0 0.0
      %1436 = vmatpush1.msra.mxu0 0.0
      %1437 = vmatprep.subr.mxu0 0.0
      %1438 = vmatpush1.msra.mxu0 0.0
      %1439 = vmatprep.subr.mxu0 0.0
      %1440 = vmatpush1.msra.mxu0 0.0
      %1441 = vmatprep.subr.mxu0 0.0
      %1442 = vmatpush1.msra.mxu0 0.0
      %1443 = vmatprep.subr.mxu0 0.0
      %1444 = vmatpush1.msra.mxu0 0.0
      %1445 = vmatprep.subr.mxu0 0.0
      %1446 = vmatpush1.msra.mxu0 0.0
      %1447 = vmatprep.subr.mxu0 0.0
      %1448 = vmatpush1.msra.mxu0 0.0
      %1449 = vmatprep.subr.mxu0 0.0
      %1450 = vmatpush1.msra.mxu0 0.0
      %1451 = vmatprep.subr.mxu0 0.0
      %1452 = vmatpush1.msra.mxu0 0.0
      %1453 = vmatprep.subr.mxu0 0.0
      %1454 = vmatpush1.msra.mxu0 0.0
      %1455 = vmatprep.subr.mxu0 0.0
      %1456 = vmatpush1.msra.mxu0 0.0
      %1457 = vmatprep.subr.mxu0 0.0
      %1458 = vmatpush1.msra.mxu0 0.0
      %1459 = vmatprep.subr.mxu0 0.0
      %1460 = vmatpush1.msra.mxu0 0.0
      %1461 = vmatprep.subr.mxu0 0.0
      %1462 = vmatpush1.msra.mxu0 0.0
      %1463 = vmatprep.subr.mxu0 0.0
      %1464 = vmatpush1.msra.mxu0 0.0
      %1465 = vmatprep.subr.mxu0 0.0
      %1466 = vmatpush1.msra.mxu0 %v1434
      %1467 = vmatprep.subr.mxu0 0.0
      %1468 = vmatpush2.msra.mxu0 0.0
      %1469 = vmatprep.subr.mxu0 0.0
      %1470 = vmatpush2.msra.mxu0 0.0
      %1471 = vmatprep.subr.mxu0 0.0
      %1472 = vmatpush2.msra.mxu0 0.0
      %1473 = vmatprep.subr.mxu0 0.0
      %1474 = vmatpush2.msra.mxu0 0.0
      %1475 = vmatprep.subr.mxu0 0.0
      %1476 = vmatpush2.msra.mxu0 0.0
      %1477 = vmatprep.subr.mxu0 0.0
      %1478 = vmatpush2.msra.mxu0 0.0
      %1479 = vmatprep.subr.mxu0 0.0
      %1480 = vmatpush2.msra.mxu0 0.0
      %1481 = vmatprep.subr.mxu0 0.0
      %1482 = vmatpush2.msra.mxu0 0.0
      %1483 = vmatprep.subr.mxu0 0.0
      %1484 = vmatpush2.msra.mxu0 0.0
      %1485 = vmatprep.subr.mxu0 0.0
      %1486 = vmatpush2.msra.mxu0 0.0
      %1487 = vmatprep.subr.mxu0 0.0
      %1488 = vmatpush2.msra.mxu0 0.0
      %1489 = vmatprep.subr.mxu0 0.0
      %1490 = vmatpush2.msra.mxu0 0.0
      %1491 = vmatprep.subr.mxu0 0.0
      %1492 = vmatpush2.msra.mxu0 0.0
      %1493 = vmatprep.subr.mxu0 0.0
      %1494 = vmatpush2.msra.mxu0 0.0
      %1495 = vmatprep.subr.mxu0 0.0
      %1496 = vmatpush2.msra.mxu0 0.0
      %1497 = vmatprep.subr.mxu0 0.0
      %1498 = vmatpush2.msra.mxu0 0.0
      %1499 = vmatprep.mubr.f32.mxu0 0.0
      %1500 = vmatmul.mubr.f32.gmra.mxu0 %v893
      %v1501 = vpop.f32.mrf.mxu0
      %v1502 = vadd.f32 0.0, %v1501
      %v1503 = vpop.f32.mrf.mxu0
      %1504 = vdwg.mxu0
      %v1505 = vmul.f32 %v1502, %v1502
      %1507 = vrot.lane.b32.xlu0 %v1505, 1
      %v1508 = vpop.permute.xlu0 %1507
      %v1510 = vsub.f32 %v1502, %v1508
      %v1511 = vmax.f32 %v1510, 0.0
      %1513 = vset.pattern.permute.xlu0 0
      %1514 = vperm.xlu0 %1513, %v1502
      %v1515 = vpop.permute.xlu0 %1514
      %v1517 = vsub.f32 %v1416, %v1515
      %v1518 = vsub.f32 %v1418, %v1515
      %v1519 = vadd.f32 %v1511, 1e-05
      %v1520 = vrsqrt.pop %v1519
      %1522 = vset.pattern.permute.xlu0 1
      %1523 = vperm.xlu0 %1522, %v1520
      %v1524 = vpop.permute.xlu0 %1523
      %v1526 = vmul.f32 %v1517, %v1524
      %v1527 = vmul.f32 %v1518, %v1524
      %1529 = vset.pattern.permute.xlu0 0
      %1530 = vperm.xlu0 %1529, %v1423
      %v1531 = vpop.permute.xlu0 %1530
      %v1533 = vmul.f32 %v1526, %v1531
      %v1534 = vmul.f32 %v1527, %v1531
      %1536 = vset.pattern.permute.xlu0 0
      %1537 = vperm.xlu0 %1536, %v1425
      %v1538 = vpop.permute.xlu0 %1537
      %v1540 = vadd.f32 %v1533, %v1538
      %v1541 = vadd.f32 %v1534, %v1538
      %v1542 = vsub.f32 0.0, %v1540
      %v1543 = vsub.f32 0.0, %v1541
      %v1544 = vmul.f32 %v1542, 1.442695
      %v1545 = vpow.pop %v1544
      %v1546 = vmul.f32 %v1543, 1.442695
      %v1547 = vpow.pop %v1546
      %v1548 = vadd.f32 %v1545, 1.0
      %v1549 = vadd.f32 %v1547, 1.0
      %v1550 = vrcp.pop %v1548
      %v1551 = vrcp.pop %v1549
      %v1552 = vmul.f32 %v1540, %v1550
      %v1553 = vmul.f32 %v1541, %v1551
      %s1554 = scalar_lea.vmem %s320, 8
      %v1555 = vld [vmem:[%s1554] sm:$0xff]
      %1557 = vset.pattern.permute.xlu0 0
      %1558 = vperm.xlu0 %1557, %v1555
      %v1559 = vpop.permute.xlu0 %1558
      %v1561 = vadd.f32 %v1552, %v1559
      %v1562 = vadd.f32 %v1553, %v1559
      %s1563 = scalar_lea.vmem %s5, 12
      %v1564 = vld [vmem:[%s1563] sm:$0xf]
      %s1565 = scalar_lea.vmem %s6, 80
      %v1566 = vld [vmem:[%s1565] sm:$0xff]
      %1567 = vrot.lane.b32.xlu0 %v1561, 17
      %v1568 = vpop.permute.xlu0 %1567
      %1569 = vrot.lane.b32.xlu0 %v1562, 17
      %v1570 = vpop.permute.xlu0 %1569
      %v1571 = vsel %vm437, %v1568, %v1570
      %v1572 = vsel %vm437, %v1570, %v1568
      %v1573 = vmul.f32 %v1572, %v447
      %v1574 = vmul.f32 %v1571, %v451
      %1575 = vrot.lane.b32.xlu0 %v1561, 16
      %v1576 = vpop.permute.xlu0 %1575
      %1577 = vrot.lane.b32.xlu0 %v1562, 16
      %v1578 = vpop.permute.xlu0 %1577
      %v1579 = vsel %vm466, %v1576, %v1578
      %v1580 = vsel %vm466, %v1578, %v1576
      %v1581 = vmul.f32 %v1580, %v477
      %v1582 = vmul.f32 %v1579, %v481
      %1583 = vrot.lane.b32.xlu0 %v1561, 15
      %v1584 = vpop.permute.xlu0 %1583
      %1585 = vrot.lane.b32.xlu0 %v1562, 15
      %v1586 = vpop.permute.xlu0 %1585
      %v1587 = vsel %vm496, %v1584, %v1586
      %v1588 = vsel %vm496, %v1586, %v1584
      %v1589 = vmul.f32 %v1588, %v507
      %v1590 = vmul.f32 %v1587, %v511
      %1591 = vrot.lane.b32.xlu0 %v1561, 1
      %v1592 = vpop.permute.xlu0 %1591
      %1593 = vrot.lane.b32.xlu0 %v1562, 1
      %v1594 = vpop.permute.xlu0 %1593
      %v1595 = vsel %vm526, %v1592, %v1594
      %v1596 = vsel %vm526, %v1594, %v1592
      %v1597 = vmul.f32 %v1596, %v537
      %v1598 = vmul.f32 %v1595, %v541
      %1599 = vrot.lane.b32.xlu0 %v1561, 127
      %v1600 = vpop.permute.xlu0 %1599
      %1601 = vrot.lane.b32.xlu0 %v1562, 127
      %v1602 = vpop.permute.xlu0 %1601
      %v1603 = vsel %vm556, %v1600, %v1602
      %v1604 = vsel %vm556, %v1602, %v1600
      %v1605 = vmul.f32 %v1603, %v567
      %v1606 = vmul.f32 %v1604, %v571
      %1607 = vrot.lane.b32.xlu0 %v1561, 113
      %v1608 = vpop.permute.xlu0 %1607
      %1609 = vrot.lane.b32.xlu0 %v1562, 113
      %v1610 = vpop.permute.xlu0 %1609
      %v1611 = vsel %vm586, %v1608, %v1610
      %v1612 = vsel %vm586, %v1610, %v1608
      %v1613 = vmul.f32 %v1611, %v597
      %v1614 = vmul.f32 %v1612, %v601
      %1615 = vrot.lane.b32.xlu0 %v1561, 112
      %v1616 = vpop.permute.xlu0 %1615
      %1617 = vrot.lane.b32.xlu0 %v1562, 112
      %v1618 = vpop.permute.xlu0 %1617
      %v1619 = vsel %vm616, %v1616, %v1618
      %v1620 = vsel %vm616, %v1618, %v1616
      %v1621 = vmul.f32 %v1619, %v627
      %v1622 = vmul.f32 %v1620, %v631
      %1623 = vrot.lane.b32.xlu0 %v1561, 111
      %v1624 = vpop.permute.xlu0 %1623
      %1625 = vrot.lane.b32.xlu0 %v1562, 111
      %v1626 = vpop.permute.xlu0 %1625
      %v1627 = vsel %vm646, %v1624, %v1626
      %v1628 = vsel %vm646, %v1626, %v1624
      %v1629 = vmul.f32 %v1627, %v657
      %v1630 = vmul.f32 %v1628, %v661
      %v1631 = vpack.c.bf16 %v1581, %v1573
      %v1632 = vpack.c.bf16 %v1582, %v1574
      %v1633 = vpack.c.bf16 %v1597, %v1589
      %v1634 = vpack.c.bf16 %v1598, %v1590
      %v1635 = vpack.c.bf16 %v1605, %v1561
      %v1636 = vpack.c.bf16 %v1606, %v1562
      %v1637 = vpack.c.bf16 %v1621, %v1613
      %v1638 = vpack.c.bf16 %v1622, %v1614
      %v1639 = vpack.c.bf16 %v1629, %v1629
      %v1640 = vpack.c.bf16 %v1630, %v1630
      %1642 = vset.pattern.permute.xlu0 0
      %1643 = vperm.xlu0 %1642, %v1566
      %v1644 = vpop.permute.xlu0 %1643
      %v1647 = vsel %vm824, %v1564, 0
      %v1650 = vsel %vm828, %v1639, 0
      %v1653 = vsel %vm828, %v1640, 0
      %1655 = vmatprep.subr.bf16.mxu0 0
      %1656 = vmatpush1.bf16.msra.mxu0 0
      %1657 = vmatprep.subr.bf16.mxu0 0
      %1658 = vmatpush1.bf16.msra.mxu0 0
      %1659 = vmatprep.subr.bf16.mxu0 0
      %1660 = vmatpush1.bf16.msra.mxu0 0
      %1661 = vmatprep.subr.bf16.mxu0 %v1653
      %1662 = vmatpush1.bf16.msra.mxu0 %v1650
      %1663 = vmatprep.subr.bf16.mxu0 %v1638
      %1664 = vmatpush1.bf16.msra.mxu0 %v1637
      %1665 = vmatprep.subr.bf16.mxu0 %v1636
      %1666 = vmatpush1.bf16.msra.mxu0 %v1635
      %1667 = vmatprep.subr.bf16.mxu0 %v1634
      %1668 = vmatpush1.bf16.msra.mxu0 %v1633
      %1669 = vmatprep.subr.bf16.mxu0 %v1632
      %1670 = vmatpush1.bf16.msra.mxu0 %v1631
      %1671 = vmatprep.subr.bf16.mxu0 0
      %1672 = vmatpush2.bf16.msra.mxu0 0
      %1673 = vmatprep.subr.bf16.mxu0 0
      %1674 = vmatpush2.bf16.msra.mxu0 0
      %1675 = vmatprep.subr.bf16.mxu0 0
      %1676 = vmatpush2.bf16.msra.mxu0 0
      %1677 = vmatprep.subr.bf16.mxu0 0
      %1678 = vmatpush2.bf16.msra.mxu0 0
      %1679 = vmatprep.subr.bf16.mxu0 0
      %1680 = vmatpush2.bf16.msra.mxu0 0
      %1681 = vmatprep.subr.bf16.mxu0 0
      %1682 = vmatpush2.bf16.msra.mxu0 0
      %1683 = vmatprep.subr.bf16.mxu0 0
      %1684 = vmatpush2.bf16.msra.mxu0 0
      %1685 = vmatprep.subr.bf16.mxu0 0
      %1686 = vmatpush2.bf16.msra.mxu0 0
      %1687 = vmatprep.mubr.bf16.mxu0 0
      %1688 = vmatmul.mubr.bf16.gmra.mxu0 %v1647
      %v1689 = vpop.f32.mrf.mxu0
      %v1690 = vadd.f32 %v1644, %v1689
      %v1691 = vpop.f32.mrf.mxu0
      %v1692 = vadd.f32 %v1644, %v1691
      %v1693 = vpop.f32.mrf.mxu0
      %v1694 = vpop.f32.mrf.mxu0
      %1695 = vdwg.mxu0
      %s1696 = scalar_lea.vmem %s6, 88
      %v1697 = vld [vmem:[%s1696] sm:$0xff]
      %s1698 = scalar_lea.vmem %s6, 96
      %v1699 = vld [vmem:[%s1698] sm:$0xff]
      %v1700 = vadd.f32 %v1690, %v1692
      %1701 = vadd.xlane.f32.xlu0 %v1700
      %v1702 = vpop.xlane.xlu0 %1701
      %v1703 = vmul.f32 %v1690, %v1690
      %v1704 = vmul.f32 %v1692, %v1692
      %v1705 = vadd.f32 %v1703, %v1704
      %1706 = vadd.xlane.f32.xlu0 %v1705
      %v1707 = vpop.xlane.xlu0 %1706
      %v1708 = vsel %vm888, %v1702, %v1707
      %1709 = vmatprep.subr.mxu0 0.0
      %1710 = vmatpush1.msra.mxu0 0.0
      %1711 = vmatprep.subr.mxu0 0.0
      %1712 = vmatpush1.msra.mxu0 0.0
      %1713 = vmatprep.subr.mxu0 0.0
      %1714 = vmatpush1.msra.mxu0 0.0
      %1715 = vmatprep.subr.mxu0 0.0
      %1716 = vmatpush1.msra.mxu0 0.0
      %1717 = vmatprep.subr.mxu0 0.0
      %1718 = vmatpush1.msra.mxu0 0.0
      %1719 = vmatprep.subr.mxu0 0.0
      %1720 = vmatpush1.msra.mxu0 0.0
      %1721 = vmatprep.subr.mxu0 0.0
      %1722 = vmatpush1.msra.mxu0 0.0
      %1723 = vmatprep.subr.mxu0 0.0
      %1724 = vmatpush1.msra.mxu0 0.0
      %1725 = vmatprep.subr.mxu0 0.0
      %1726 = vmatpush1.msra.mxu0 0.0
      %1727 = vmatprep.subr.mxu0 0.0
      %1728 = vmatpush1.msra.mxu0 0.0
      %1729 = vmatprep.subr.mxu0 0.0
      %1730 = vmatpush1.msra.mxu0 0.0
      %1731 = vmatprep.subr.mxu0 0.0
      %1732 = vmatpush1.msra.mxu0 0.0
      %1733 = vmatprep.subr.mxu0 0.0
      %1734 = vmatpush1.msra.mxu0 0.0
      %1735 = vmatprep.subr.mxu0 0.0
      %1736 = vmatpush1.msra.mxu0 0.0
      %1737 = vmatprep.subr.mxu0 0.0
      %1738 = vmatpush1.msra.mxu0 0.0
      %1739 = vmatprep.subr.mxu0 0.0
      %1740 = vmatpush1.msra.mxu0 %v1708
      %1741 = vmatprep.subr.mxu0 0.0
      %1742 = vmatpush2.msra.mxu0 0.0
      %1743 = vmatprep.subr.mxu0 0.0
      %1744 = vmatpush2.msra.mxu0 0.0
      %1745 = vmatprep.subr.mxu0 0.0
      %1746 = vmatpush2.msra.mxu0 0.0
      %1747 = vmatprep.subr.mxu0 0.0
      %1748 = vmatpush2.msra.mxu0 0.0
      %1749 = vmatprep.subr.mxu0 0.0
      %1750 = vmatpush2.msra.mxu0 0.0
      %1751 = vmatprep.subr.mxu0 0.0
      %1752 = vmatpush2.msra.mxu0 0.0
      %1753 = vmatprep.subr.mxu0 0.0
      %1754 = vmatpush2.msra.mxu0 0.0
      %1755 = vmatprep.subr.mxu0 0.0
      %1756 = vmatpush2.msra.mxu0 0.0
      %1757 = vmatprep.subr.mxu0 0.0
      %1758 = vmatpush2.msra.mxu0 0.0
      %1759 = vmatprep.subr.mxu0 0.0
      %1760 = vmatpush2.msra.mxu0 0.0
      %1761 = vmatprep.subr.mxu0 0.0
      %1762 = vmatpush2.msra.mxu0 0.0
      %1763 = vmatprep.subr.mxu0 0.0
      %1764 = vmatpush2.msra.mxu0 0.0
      %1765 = vmatprep.subr.mxu0 0.0
      %1766 = vmatpush2.msra.mxu0 0.0
      %1767 = vmatprep.subr.mxu0 0.0
      %1768 = vmatpush2.msra.mxu0 0.0
      %1769 = vmatprep.subr.mxu0 0.0
      %1770 = vmatpush2.msra.mxu0 0.0
      %1771 = vmatprep.subr.mxu0 0.0
      %1772 = vmatpush2.msra.mxu0 0.0
      %1773 = vmatprep.mubr.f32.mxu0 0.0
      %1774 = vmatmul.mubr.f32.gmra.mxu0 %v893
      %v1775 = vpop.f32.mrf.mxu0
      %v1776 = vadd.f32 0.0, %v1775
      %v1777 = vpop.f32.mrf.mxu0
      %1778 = vdwg.mxu0
      %v1779 = vmul.f32 %v1776, %v1776
      %1781 = vrot.lane.b32.xlu0 %v1779, 1
      %v1782 = vpop.permute.xlu0 %1781
      %v1784 = vsub.f32 %v1776, %v1782
      %v1785 = vmax.f32 %v1784, 0.0
      %1787 = vset.pattern.permute.xlu0 0
      %1788 = vperm.xlu0 %1787, %v1776
      %v1789 = vpop.permute.xlu0 %1788
      %v1791 = vsub.f32 %v1690, %v1789
      %v1792 = vsub.f32 %v1692, %v1789
      %v1793 = vadd.f32 %v1785, 1e-05
      %v1794 = vrsqrt.pop %v1793
      %1796 = vset.pattern.permute.xlu0 1
      %1797 = vperm.xlu0 %1796, %v1794
      %v1798 = vpop.permute.xlu0 %1797
      %v1800 = vmul.f32 %v1791, %v1798
      %v1801 = vmul.f32 %v1792, %v1798
      %1803 = vset.pattern.permute.xlu0 0
      %1804 = vperm.xlu0 %1803, %v1697
      %v1805 = vpop.permute.xlu0 %1804
      %v1807 = vmul.f32 %v1800, %v1805
      %v1808 = vmul.f32 %v1801, %v1805
      %1810 = vset.pattern.permute.xlu0 0
      %1811 = vperm.xlu0 %1810, %v1699
      %v1812 = vpop.permute.xlu0 %1811
      %v1814 = vadd.f32 %v1807, %v1812
      %v1815 = vadd.f32 %v1808, %v1812
      %v1816 = vsub.f32 0.0, %v1814
      %v1817 = vsub.f32 0.0, %v1815
      %v1818 = vmul.f32 %v1816, 1.442695
      %v1819 = vpow.pop %v1818
      %v1820 = vmul.f32 %v1817, 1.442695
      %v1821 = vpow.pop %v1820
      %v1822 = vadd.f32 %v1819, 1.0
      %v1823 = vadd.f32 %v1821, 1.0
      %v1824 = vrcp.pop %v1822
      %v1825 = vrcp.pop %v1823
      %v1826 = vmul.f32 %v1814, %v1824
      %v1827 = vmul.f32 %v1815, %v1825
      %v1828 = vadd.f32 %v1826, %v1287
      %v1829 = vadd.f32 %v1827, %v1288
      %1830 = vst [vmem:[%s325] sm:$0xff] %v1828
      %1831 = vst [vmem:[%s325 + $0x8] sm:$0xff] %v1829
      %p1832 = scmp.lt.s32.totalorder %s19, 1
      %s1833 = scalar_select %p1832, %s19, 1
      %s1834 = smul.addr %s1833, 2
      %s1835 = smul.addr %s1834, 8
      %s1836 = scalar_lea.vmem %s8, %s1835
      // Predicated region
      $region53: #{decoder_forward.1} parent=51 // pred_check
        %p1837 = pneg %p215
      $region54: #{decoder_forward.1} parent=51 // pred_check_branch
        %1839 = sbr.rel (%p1837) target = $region56
      $region55: #{decoder_forward.1} parent=51 // pred_region
        _
      $region56: #{decoder_forward.1} parent=51 // pred_fallthru
        _
    $region52: #{decoder_forward.1} parent=5 // pred_fallthru
      _
    %p1840 = scmp.le.s32.totalorder 2, %s14
    // Predicated region
    $region57: #{decoder_forward.1} parent=5 // pred_check
      %p1841 = pneg %p1840
    $region58: #{decoder_forward.1} parent=5 // pred_check_branch
      %1843 = sbr.rel (%p1841) target = $region60
    $region59: #{decoder_forward.1} parent=5 // pred_region
      %s1844 = ssub.s32 %s14, 2
      // Predicated region
      $region61: #{decoder_forward.1} parent=59 // pred_check
        %p1845 = pneg %p221
      $region62: #{decoder_forward.1} parent=59 // pred_check_branch
        %1847 = sbr.rel (%p1845) target = $region64
      $region63: #{decoder_forward.1} parent=59 // pred_region
        %p1848 = scmp.lt.s32.totalorder %s20, 1
        %s1849 = scalar_select %p1848, %s20, 1
        %s1850 = smul.addr %s1849, 2
        %s1851 = smul.addr %s1850, 8
        %s1852 = scalar_lea.vmem %s8, %s1851
      $region64: #{decoder_forward.1} parent=59 // pred_fallthru
        _
    $region60: #{decoder_forward.1} parent=5 // pred_fallthru
      _
  $region6: #{decoder_forward.1} parent=0 // loop_footer
    %s18 = sadd.s32 1, %s14
  $region7: #{decoder_forward.1} parent=0 // loop_footer_branch
    %13 = sbr.rel target = $region3
  $region8: #{decoder_forward.1} parent=0 // loop_exit
    _

</llo_original>
